<compile_context>
chip_gen: v5e
topology: v5e:2x2
jax: 0.10.0
libtpu: 0.0.40
codegen_flags: <defaults>
</compile_context>

<pallas_src>
import functools
import math

import jax
import jax.numpy as jnp
from jax.experimental import pallas as pl
from jax.experimental.pallas import tpu as pltpu

LN_EPS = 1e-5  # matches torch.nn.LayerNorm default


def _layer_norm_f32(x, g, b):
    mu = jnp.mean(x, axis=-1, keepdims=True)
    var = jnp.mean((x - mu) ** 2, axis=-1, keepdims=True)
    return (x - mu) * jax.lax.rsqrt(var + LN_EPS) * g + b


def _encoder_block_kernel(block_b, seq, num_heads, recip_approx,
                          x_ref,
                          w_in_ref, b_in_ref, w_out_ref, b_out_ref,
                          w1_ref, b1_ref, w2_ref, b2_ref,
                          g1_ref, be1_ref, g2_ref, be2_ref,
                          o_ref):
    x = x_ref[...]                               # (rows, E), native dtype
    rows, E = x.shape
    H = num_heads
    Dh = E // H
    cdt = x.dtype                                # MXU operand dtype (bf16/f32)

    # ---- fused QKV projection (scale already folded into w_in / b_in) ----
    qkv = jnp.dot(x, w_in_ref[...], preferred_element_type=jnp.float32)
    qkv = (qkv + b_in_ref[...]).astype(cdt)      # (rows, 3E) in compute dtype

    # ---- per-head attention, batched over the batch tile ----
    head_outs = []
    for h in range(H):
        q0 = h * Dh
        qh = qkv[:, q0:q0 + Dh].reshape(block_b, seq, Dh)
        kh = qkv[:, E + q0:E + q0 + Dh].reshape(block_b, seq, Dh)
        vh = qkv[:, 2 * E + q0:2 * E + q0 + Dh].reshape(block_b, seq, Dh)

        s = jnp.einsum('bqd,bkd->bqk', qh, kh,
                       preferred_element_type=jnp.float32)      # (bt,S,S) f32
        s = s - jnp.max(s, axis=-1, keepdims=True)
        p = jnp.exp(s)
        l = jnp.sum(p, axis=-1, keepdims=True)                  # (bt,S,1) f32
        oh = jnp.einsum('bqk,bkd->bqd', p.astype(cdt), vh,
                        preferred_element_type=jnp.float32)     # (bt,S,Dh) f32
        # Normalize AFTER the PV matmul: rows*Dh multiplies instead of rows*S.
        oh = oh * pl.reciprocal(l, approx=recip_approx)
        head_outs.append(oh.reshape(rows, Dh).astype(cdt))

    # One lane-dense (rows, E) value; no VMEM scratch round-trip.
    attn = jnp.concatenate(head_outs, axis=-1)

    # ---- output projection + residual + LayerNorm1 (f32) ----
    attn_out = (jnp.dot(attn, w_out_ref[...],
                        preferred_element_type=jnp.float32) + b_out_ref[...])
    x1 = _layer_norm_f32(x.astype(jnp.float32) + attn_out,
                         g1_ref[...], be1_ref[...])

    # ---- feed-forward: Linear -> ReLU -> Linear (dropout p=0 elided) ----
    hid = (jnp.dot(x1.astype(cdt), w1_ref[...],
                   preferred_element_type=jnp.float32) + b1_ref[...])
    hid = jnp.maximum(hid, 0.0)
    ff = (jnp.dot(hid.astype(cdt), w2_ref[...],
                  preferred_element_type=jnp.float32) + b2_ref[...])

    # ---- residual + LayerNorm2 ----
    x2 = _layer_norm_f32(x1 + ff, g2_ref[...], be2_ref[...])
    o_ref[...] = x2.astype(o_ref.dtype)


def _pick_block_b(B, S, target_rows):
    """Largest divisor d of B with d*S rows <= target_rows, rows % 8 == 0,
    and (when B >= 2) at least 2 grid steps so both v7x TensorCores get work."""
    candidates = [d for d in range(1, B + 1)
                  if B % d == 0 and (d * S) % 8 == 0]
    if not candidates:
        return B          # single block covering the full array (shape escape)
    par = [d for d in candidates if B // d >= 2] or candidates
    fit = [d for d in par if d * S <= target_rows] or [min(par)]
    return max(fit)


def mha_encoder_block(x, params, num_heads, block_b=None):
    B, S, E = x.shape
    H = num_heads
    assert E % H == 0, "embed dim must be divisible by num_heads"
    Dh = E // H
    FF = params["w1"].shape[0]
    cdt = x.dtype
    f32 = jnp.float32

    # Physical VMEM capacity of this chip generation (v7x: 64 MiB per TC).
    try:
        vmem_cap = int(pltpu.get_tpu_info().vmem_capacity_bytes)
    except Exception:
        vmem_cap = 64 * 2 ** 20          # conservative (v7x) fallback

    # Batch tile: fill the MXU M dim; smaller target on small-VMEM chips.
    if block_b is None:
        target_rows = 256 if vmem_cap <= 64 * 2 ** 20 else 512
        block_b = _pick_block_b(B, S, target_rows)
    assert B % block_b == 0
    rows = block_b * S
    grid = (B // block_b,)

    # ---- host-side weight prep ----
    # (out, in) -> (in, out) so the kernel never transposes; fold the
    # 1/sqrt(Dh) query scale into the Q columns; cast matmul weights to the
    # compute dtype (bf16 in production) while biases / LN params stay f32.
    scale = 1.0 / math.sqrt(Dh)
    col_scale = jnp.concatenate([jnp.full((E,), scale, f32),
                                 jnp.ones((2 * E,), f32)])
    w_in_t = (params["w_in"].astype(f32).T * col_scale[None, :]).astype(cdt)
    b_in = (params["b_in"].astype(f32) * col_scale).reshape(1, -1)
    w_out_t = params["w_out"].astype(cdt).T
    w1_t = params["w1"].astype(cdt).T
    w2_t = params["w2"].astype(cdt).T
    b_out = params["b_out"].astype(f32).reshape(1, -1)
    b1 = params["b1"].astype(f32).reshape(1, -1)
    b2 = params["b2"].astype(f32).reshape(1, -1)
    g1 = params["g1"].astype(f32).reshape(1, -1)
    be1 = params["be1"].astype(f32).reshape(1, -1)
    g2 = params["g2"].astype(f32).reshape(1, -1)
    be2 = params["be2"].astype(f32).reshape(1, -1)

    x2d = x.reshape(B * S, E)

    csz = x.dtype.itemsize
    weight_bytes = (E * 3 * E + E * E + E * FF + FF * E) * csz
    small_bytes = (3 * E + 3 * E + FF + 4 * E) * 4
    io_bytes = 2 * 2 * rows * E * csz                   # double-buffered in/out
    act_bytes = (rows * 3 * E * (4 + csz)               # qkv f32 + cdt copy
                 + 2 * block_b * S * S * 4              # scores + probs (1 head)
                 + rows * E * csz                       # packed head outputs
                 + rows * FF * (4 + csz)                # ffn hidden
                 + 3 * rows * E * 4)                    # x1 / ff / x2 in f32

    kernel = functools.partial(_encoder_block_kernel, block_b, S, H,
                               bool(x.dtype == jnp.bfloat16))

    def build(single_buffer_weights):
        def const_spec(shape):
            # Grid-invariant blocks are DMA'd once; a single buffer halves
            # their VMEM footprint vs the default double buffering.
            if single_buffer_weights:
                return pl.BlockSpec(shape, lambda b: (0, 0),
                                    pipeline_mode=pl.Buffered(1))
            return pl.BlockSpec(shape, lambda b: (0, 0))

        wfac = 1 if single_buffer_weights else 2
        vmem_limit = int(min(int(0.8 * vmem_cap),
                             max(16 * 2 ** 20,
                                 wfac * (weight_bytes + small_bytes)
                                 + io_bytes + act_bytes + 4 * 2 ** 20)))

        in_specs = [
            pl.BlockSpec((rows, E), lambda b: (b, 0)),       # x rows for tile
            const_spec((E, 3 * E)), const_spec((1, 3 * E)),  # in_proj W / b
            const_spec((E, E)), const_spec((1, E)),          # out_proj W / b
            const_spec((E, FF)), const_spec((1, FF)),        # lin0 W / b
            const_spec((FF, E)), const_spec((1, E)),         # lin1 W / b
            const_spec((1, E)), const_spec((1, E)),          # norm1 gamma/beta
            const_spec((1, E)), const_spec((1, E)),          # norm2 gamma/beta
        ]
        out_spec = pl.BlockSpec((rows, E), lambda b: (b, 0))

        return pl.pallas_call(
            kernel,
            out_shape=jax.ShapeDtypeStruct((B * S, E), x.dtype),
            grid_spec=pltpu.PrefetchScalarGridSpec(
                num_scalar_prefetch=0,
                grid=grid,
                in_specs=in_specs,
                out_specs=out_spec,
            ),
            compiler_params=pltpu.CompilerParams(
                dimension_semantics=("parallel",),   # batch tiles independent
                vmem_limit_bytes=vmem_limit,
            ),
        )

    args = (x2d, w_in_t, b_in, w_out_t, b_out, w1_t, b1, w2_t, b2,
            g1, be1, g2, be2)
    try:
        out2d = build(True)(*args)
    except Exception:
        # pl.Buffered(1) unsupported on this jax/Mosaic build: fall back to
        # default double buffering (correctness identical, more weight VMEM).
        out2d = build(False)(*args)
    return out2d.reshape(B, S, E)


# ---------------- pure-JAX reference (for correctness check) ----------------
def reference(x, params, num_heads):
    B, S, E = x.shape
    H, Dh = num_heads, E // num_heads
    qkv = x @ params["w_in"].T + params["b_in"]
    q, k, v = jnp.split(qkv, 3, axis=-1)
    q = q.reshape(B, S, H, Dh).transpose(0, 2, 1, 3) * (1.0 / math.sqrt(Dh))
    k = k.reshape(B, S, H, Dh).transpose(0, 2, 1, 3)
    v = v.reshape(B, S, H, Dh).transpose(0, 2, 1, 3)
    s = jnp.einsum('bhqd,bhkd->bhqk', q, k)
    p = jax.nn.softmax(s, axis=-1)
    a = jnp.einsum('bhqk,bhkd->bhqd', p, v).transpose(0, 2, 1, 3).reshape(B, S, E)
    attn_out = a @ params["w_out"].T + params["b_out"]
    x1 = _layer_norm_f32(x + attn_out, params["g1"], params["be1"])
    hid = jax.nn.relu(x1 @ params["w1"].T + params["b1"])
    ff = hid @ params["w2"].T + params["b2"]
    return _layer_norm_f32(x1 + ff, params["g2"], params["be2"])


if __name__ == "__main__":
    # Small shapes consistent with the module: input_dim=32, heads=4, ff=2*32.
    B, S, E, H = 2, 8, 32, 4
    FF = 2 * E

    key = jax.random.PRNGKey(0)
    ks = jax.random.split(key, 10)
    params = {
        "w_in":  0.05 * jax.random.normal(ks[0], (3 * E, E), jnp.float32),
        "b_in":  0.01 * jax.random.normal(ks[1], (3 * E,), jnp.float32),
        "w_out": 0.05 * jax.random.normal(ks[2], (E, E), jnp.float32),
        "b_out": 0.01 * jax.random.normal(ks[3], (E,), jnp.float32),
        "w1":    0.05 * jax.random.normal(ks[4], (FF, E), jnp.float32),
        "b1":    0.01 * jax.random.normal(ks[5], (FF,), jnp.float32),
        "w2":    0.05 * jax.random.normal(ks[6], (E, FF), jnp.float32),
        "b2":    0.01 * jax.random.normal(ks[7], (E,), jnp.float32),
        "g1":    jnp.ones((E,), jnp.float32),
        "be1":   jnp.zeros((E,), jnp.float32),
        "g2":    jnp.ones((E,), jnp.float32),
        "be2":   jnp.zeros((E,), jnp.float32),
    }
    x = jax.random.normal(ks[8], (B, S, E), jnp.float32)
    ref = reference(x, params, H)

    # f32 path: tight correctness check against the pure-JAX reference.
    out = jax.block_until_ready(mha_encoder_block(x, params, H))
    assert out.shape == (B, S, E)
    err = float(jnp.max(jnp.abs(out - ref)))
    assert jnp.allclose(out, ref, rtol=1e-4, atol=1e-4), err

    # bf16 production-style path: bf16 MXU operands / weights, f32 accumulation
    # and f32 LN/softmax math; loose tolerance accounts for bf16 rounding.
    x_bf = x.astype(jnp.bfloat16)
    out_bf = jax.block_until_ready(mha_encoder_block(x_bf, params, H))
    assert out_bf.dtype == jnp.bfloat16
    err_bf = float(jnp.max(jnp.abs(out_bf.astype(jnp.float32) - ref)))
    assert err_bf < 0.1, err_bf

    print("KERNEL_OK")
</pallas_src>

<mosaic_0001>
module attributes {stable_mosaic.version = 11 : i64} {
  func.func @_encoder_block_kernel(%arg0: i32, %arg1: memref<8x32xf32, #tpu.memory_space<vmem>>, %arg2: memref<32x96xf32, #tpu.memory_space<vmem>>, %arg3: memref<1x96xf32, #tpu.memory_space<vmem>>, %arg4: memref<32x32xf32, #tpu.memory_space<vmem>>, %arg5: memref<1x32xf32, #tpu.memory_space<vmem>>, %arg6: memref<32x64xf32, #tpu.memory_space<vmem>>, %arg7: memref<1x64xf32, #tpu.memory_space<vmem>>, %arg8: memref<64x32xf32, #tpu.memory_space<vmem>>, %arg9: memref<1x32xf32, #tpu.memory_space<vmem>>, %arg10: memref<1x32xf32, #tpu.memory_space<vmem>>, %arg11: memref<1x32xf32, #tpu.memory_space<vmem>>, %arg12: memref<1x32xf32, #tpu.memory_space<vmem>>, %arg13: memref<1x32xf32, #tpu.memory_space<vmem>>, %arg14: memref<8x32xf32, #tpu.memory_space<vmem>>) attributes {dimension_semantics = [#tpu.dimension_semantics<parallel>], iteration_bounds = array<i64: 2>, scalar_prefetch = 0 : i64, scratch_operands = 0 : i64, tpu.core_type = #tpu.core_type<tc>, window_params = [{transform_indices = @transform_0, window_bounds = array<i64: 8, 32>}, {pipeline_mode = #tpu.pipeline_mode<synchronous>, transform_indices = @transform_1, window_bounds = array<i64: 32, 96>}, {pipeline_mode = #tpu.pipeline_mode<synchronous>, transform_indices = @transform_2, window_bounds = array<i64: 1, 96>}, {pipeline_mode = #tpu.pipeline_mode<synchronous>, transform_indices = @transform_3, window_bounds = array<i64: 32, 32>}, {pipeline_mode = #tpu.pipeline_mode<synchronous>, transform_indices = @transform_4, window_bounds = array<i64: 1, 32>}, {pipeline_mode = #tpu.pipeline_mode<synchronous>, transform_indices = @transform_5, window_bounds = array<i64: 32, 64>}, {pipeline_mode = #tpu.pipeline_mode<synchronous>, transform_indices = @transform_6, window_bounds = array<i64: 1, 64>}, {pipeline_mode = #tpu.pipeline_mode<synchronous>, transform_indices = @transform_7, window_bounds = array<i64: 64, 32>}, {pipeline_mode = #tpu.pipeline_mode<synchronous>, transform_indices = @transform_8, window_bounds = array<i64: 1, 32>}, {pipeline_mode = #tpu.pipeline_mode<synchronous>, transform_indices = @transform_9, window_bounds = array<i64: 1, 32>}, {pipeline_mode = #tpu.pipeline_mode<synchronous>, transform_indices = @transform_10, window_bounds = array<i64: 1, 32>}, {pipeline_mode = #tpu.pipeline_mode<synchronous>, transform_indices = @transform_11, window_bounds = array<i64: 1, 32>}, {pipeline_mode = #tpu.pipeline_mode<synchronous>, transform_indices = @transform_12, window_bounds = array<i64: 1, 32>}, {transform_indices = @transform_13, window_bounds = array<i64: 8, 32>}]} {
    %c0 = arith.constant 0 : index
    %c0_0 = arith.constant 0 : index
    %0 = vector.load %arg1[%c0, %c0_0] : memref<8x32xf32, #tpu.memory_space<vmem>>, vector<8x32xf32>
    %c0_1 = arith.constant 0 : index
    %c0_2 = arith.constant 0 : index
    %1 = vector.load %arg2[%c0_1, %c0_2] : memref<32x96xf32, #tpu.memory_space<vmem>>, vector<32x96xf32>
    %cst = arith.constant dense<0.000000e+00> : vector<8x96xf32>
    %2 = tpu.matmul %0, %1, %cst {dimension_numbers = #tpu.dot_dimension_numbers<[1], [0], [0], [1], [0, 0, 1, 1], [], []>} : vector<8x32xf32>, vector<32x96xf32>, vector<8x96xf32> -> vector<8x96xf32>
    %c0_3 = arith.constant 0 : index
    %c0_4 = arith.constant 0 : index
    %3 = vector.load %arg3[%c0_3, %c0_4] : memref<1x96xf32, #tpu.memory_space<vmem>>, vector<1x96xf32>
    %4 = vector.broadcast %3 : vector<1x96xf32> to vector<8x96xf32>
    %5 = arith.addf %2, %4 : vector<8x96xf32>
    %6 = vector.extract_strided_slice %5 {offsets = [0, 0], sizes = [8, 8], strides = [1, 1]} : vector<8x96xf32> to vector<8x8xf32>
    %7 = vector.shape_cast %6 : vector<8x8xf32> to vector<1x8x8xf32>
    %8 = vector.extract_strided_slice %5 {offsets = [0, 32], sizes = [8, 8], strides = [1, 1]} : vector<8x96xf32> to vector<8x8xf32>
    %9 = vector.shape_cast %8 : vector<8x8xf32> to vector<1x8x8xf32>
    %10 = vector.extract_strided_slice %5 {offsets = [0, 64], sizes = [8, 8], strides = [1, 1]} : vector<8x96xf32> to vector<8x8xf32>
    %11 = vector.shape_cast %10 : vector<8x8xf32> to vector<1x8x8xf32>
    "tpu.trace_start"() <{level = 10 : i32, message = "bqd,bkd->bqk"}> : () -> ()
    %cst_5 = arith.constant dense<0.000000e+00> : vector<1x8x8xf32>
    %12 = tpu.matmul %7, %9, %cst_5 {dimension_numbers = #tpu.dot_dimension_numbers<[2], [2], [1], [1], [0, 0, 0, 1, 1, 1], [0], [0]>} : vector<1x8x8xf32>, vector<1x8x8xf32>, vector<1x8x8xf32> -> vector<1x8x8xf32>
    "tpu.trace_stop"() : () -> ()
    %cst_6 = arith.constant dense<0xFF800000> : vector<1x8xf32>
    %13 = vector.multi_reduction <maximumf>, %12, %cst_6 [2] : vector<1x8x8xf32> to vector<1x8xf32>
    %14 = vector.shape_cast %13 : vector<1x8xf32> to vector<1x8x1xf32>
    %15 = vector.broadcast %14 : vector<1x8x1xf32> to vector<1x8x8xf32>
    %16 = arith.subf %12, %15 : vector<1x8x8xf32>
    %17 = math.exp %16 : vector<1x8x8xf32>
    %cst_7 = arith.constant dense<0.000000e+00> : vector<1x8xf32>
    %18 = vector.multi_reduction <add>, %17, %cst_7 [2] : vector<1x8x8xf32> to vector<1x8xf32>
    %19 = vector.shape_cast %18 : vector<1x8xf32> to vector<1x8x1xf32>
    "tpu.trace_start"() <{level = 10 : i32, message = "bqk,bkd->bqd"}> : () -> ()
    %cst_8 = arith.constant dense<0.000000e+00> : vector<1x8x8xf32>
    %20 = tpu.matmul %17, %11, %cst_8 {dimension_numbers = #tpu.dot_dimension_numbers<[2], [1], [1], [2], [0, 0, 0, 1, 1, 2], [0], [0]>} : vector<1x8x8xf32>, vector<1x8x8xf32>, vector<1x8x8xf32> -> vector<1x8x8xf32>
    "tpu.trace_stop"() : () -> ()
    %21 = tpu.reciprocal %19 : vector<1x8x1xf32> -> vector<1x8x1xf32>
    %22 = vector.broadcast %21 : vector<1x8x1xf32> to vector<1x8x8xf32>
    %23 = arith.mulf %20, %22 : vector<1x8x8xf32>
    %24 = vector.shape_cast %23 : vector<1x8x8xf32> to vector<8x8xf32>
    %25 = vector.extract_strided_slice %5 {offsets = [0, 8], sizes = [8, 8], strides = [1, 1]} : vector<8x96xf32> to vector<8x8xf32>
    %26 = vector.shape_cast %25 : vector<8x8xf32> to vector<1x8x8xf32>
    %27 = vector.extract_strided_slice %5 {offsets = [0, 40], sizes = [8, 8], strides = [1, 1]} : vector<8x96xf32> to vector<8x8xf32>
    %28 = vector.shape_cast %27 : vector<8x8xf32> to vector<1x8x8xf32>
    %29 = vector.extract_strided_slice %5 {offsets = [0, 72], sizes = [8, 8], strides = [1, 1]} : vector<8x96xf32> to vector<8x8xf32>
    %30 = vector.shape_cast %29 : vector<8x8xf32> to vector<1x8x8xf32>
    "tpu.trace_start"() <{level = 10 : i32, message = "bqd,bkd->bqk"}> : () -> ()
    %cst_9 = arith.constant dense<0.000000e+00> : vector<1x8x8xf32>
    %31 = tpu.matmul %26, %28, %cst_9 {dimension_numbers = #tpu.dot_dimension_numbers<[2], [2], [1], [1], [0, 0, 0, 1, 1, 1], [0], [0]>} : vector<1x8x8xf32>, vector<1x8x8xf32>, vector<1x8x8xf32> -> vector<1x8x8xf32>
    "tpu.trace_stop"() : () -> ()
    %cst_10 = arith.constant dense<0xFF800000> : vector<1x8xf32>
    %32 = vector.multi_reduction <maximumf>, %31, %cst_10 [2] : vector<1x8x8xf32> to vector<1x8xf32>
    %33 = vector.shape_cast %32 : vector<1x8xf32> to vector<1x8x1xf32>
    %34 = vector.broadcast %33 : vector<1x8x1xf32> to vector<1x8x8xf32>
    %35 = arith.subf %31, %34 : vector<1x8x8xf32>
    %36 = math.exp %35 : vector<1x8x8xf32>
    %cst_11 = arith.constant dense<0.000000e+00> : vector<1x8xf32>
    %37 = vector.multi_reduction <add>, %36, %cst_11 [2] : vector<1x8x8xf32> to vector<1x8xf32>
    %38 = vector.shape_cast %37 : vector<1x8xf32> to vector<1x8x1xf32>
    "tpu.trace_start"() <{level = 10 : i32, message = "bqk,bkd->bqd"}> : () -> ()
    %cst_12 = arith.constant dense<0.000000e+00> : vector<1x8x8xf32>
    %39 = tpu.matmul %36, %30, %cst_12 {dimension_numbers = #tpu.dot_dimension_numbers<[2], [1], [1], [2], [0, 0, 0, 1, 1, 2], [0], [0]>} : vector<1x8x8xf32>, vector<1x8x8xf32>, vector<1x8x8xf32> -> vector<1x8x8xf32>
    "tpu.trace_stop"() : () -> ()
    %40 = tpu.reciprocal %38 : vector<1x8x1xf32> -> vector<1x8x1xf32>
    %41 = vector.broadcast %40 : vector<1x8x1xf32> to vector<1x8x8xf32>
    %42 = arith.mulf %39, %41 : vector<1x8x8xf32>
    %43 = vector.shape_cast %42 : vector<1x8x8xf32> to vector<8x8xf32>
    %44 = vector.extract_strided_slice %5 {offsets = [0, 16], sizes = [8, 8], strides = [1, 1]} : vector<8x96xf32> to vector<8x8xf32>
    %45 = vector.shape_cast %44 : vector<8x8xf32> to vector<1x8x8xf32>
    %46 = vector.extract_strided_slice %5 {offsets = [0, 48], sizes = [8, 8], strides = [1, 1]} : vector<8x96xf32> to vector<8x8xf32>
    %47 = vector.shape_cast %46 : vector<8x8xf32> to vector<1x8x8xf32>
    %48 = vector.extract_strided_slice %5 {offsets = [0, 80], sizes = [8, 8], strides = [1, 1]} : vector<8x96xf32> to vector<8x8xf32>
    %49 = vector.shape_cast %48 : vector<8x8xf32> to vector<1x8x8xf32>
    "tpu.trace_start"() <{level = 10 : i32, message = "bqd,bkd->bqk"}> : () -> ()
    %cst_13 = arith.constant dense<0.000000e+00> : vector<1x8x8xf32>
    %50 = tpu.matmul %45, %47, %cst_13 {dimension_numbers = #tpu.dot_dimension_numbers<[2], [2], [1], [1], [0, 0, 0, 1, 1, 1], [0], [0]>} : vector<1x8x8xf32>, vector<1x8x8xf32>, vector<1x8x8xf32> -> vector<1x8x8xf32>
    "tpu.trace_stop"() : () -> ()
    %cst_14 = arith.constant dense<0xFF800000> : vector<1x8xf32>
    %51 = vector.multi_reduction <maximumf>, %50, %cst_14 [2] : vector<1x8x8xf32> to vector<1x8xf32>
    %52 = vector.shape_cast %51 : vector<1x8xf32> to vector<1x8x1xf32>
    %53 = vector.broadcast %52 : vector<1x8x1xf32> to vector<1x8x8xf32>
    %54 = arith.subf %50, %53 : vector<1x8x8xf32>
    %55 = math.exp %54 : vector<1x8x8xf32>
    %cst_15 = arith.constant dense<0.000000e+00> : vector<1x8xf32>
    %56 = vector.multi_reduction <add>, %55, %cst_15 [2] : vector<1x8x8xf32> to vector<1x8xf32>
    %57 = vector.shape_cast %56 : vector<1x8xf32> to vector<1x8x1xf32>
    "tpu.trace_start"() <{level = 10 : i32, message = "bqk,bkd->bqd"}> : () -> ()
    %cst_16 = arith.constant dense<0.000000e+00> : vector<1x8x8xf32>
    %58 = tpu.matmul %55, %49, %cst_16 {dimension_numbers = #tpu.dot_dimension_numbers<[2], [1], [1], [2], [0, 0, 0, 1, 1, 2], [0], [0]>} : vector<1x8x8xf32>, vector<1x8x8xf32>, vector<1x8x8xf32> -> vector<1x8x8xf32>
    "tpu.trace_stop"() : () -> ()
    %59 = tpu.reciprocal %57 : vector<1x8x1xf32> -> vector<1x8x1xf32>
    %60 = vector.broadcast %59 : vector<1x8x1xf32> to vector<1x8x8xf32>
    %61 = arith.mulf %58, %60 : vector<1x8x8xf32>
    %62 = vector.shape_cast %61 : vector<1x8x8xf32> to vector<8x8xf32>
    %63 = vector.extract_strided_slice %5 {offsets = [0, 24], sizes = [8, 8], strides = [1, 1]} : vector<8x96xf32> to vector<8x8xf32>
    %64 = vector.shape_cast %63 : vector<8x8xf32> to vector<1x8x8xf32>
    %65 = vector.extract_strided_slice %5 {offsets = [0, 56], sizes = [8, 8], strides = [1, 1]} : vector<8x96xf32> to vector<8x8xf32>
    %66 = vector.shape_cast %65 : vector<8x8xf32> to vector<1x8x8xf32>
    %67 = vector.extract_strided_slice %5 {offsets = [0, 88], sizes = [8, 8], strides = [1, 1]} : vector<8x96xf32> to vector<8x8xf32>
    %68 = vector.shape_cast %67 : vector<8x8xf32> to vector<1x8x8xf32>
    "tpu.trace_start"() <{level = 10 : i32, message = "bqd,bkd->bqk"}> : () -> ()
    %cst_17 = arith.constant dense<0.000000e+00> : vector<1x8x8xf32>
    %69 = tpu.matmul %64, %66, %cst_17 {dimension_numbers = #tpu.dot_dimension_numbers<[2], [2], [1], [1], [0, 0, 0, 1, 1, 1], [0], [0]>} : vector<1x8x8xf32>, vector<1x8x8xf32>, vector<1x8x8xf32> -> vector<1x8x8xf32>
    "tpu.trace_stop"() : () -> ()
    %cst_18 = arith.constant dense<0xFF800000> : vector<1x8xf32>
    %70 = vector.multi_reduction <maximumf>, %69, %cst_18 [2] : vector<1x8x8xf32> to vector<1x8xf32>
    %71 = vector.shape_cast %70 : vector<1x8xf32> to vector<1x8x1xf32>
    %72 = vector.broadcast %71 : vector<1x8x1xf32> to vector<1x8x8xf32>
    %73 = arith.subf %69, %72 : vector<1x8x8xf32>
    %74 = math.exp %73 : vector<1x8x8xf32>
    %cst_19 = arith.constant dense<0.000000e+00> : vector<1x8xf32>
    %75 = vector.multi_reduction <add>, %74, %cst_19 [2] : vector<1x8x8xf32> to vector<1x8xf32>
    %76 = vector.shape_cast %75 : vector<1x8xf32> to vector<1x8x1xf32>
    "tpu.trace_start"() <{level = 10 : i32, message = "bqk,bkd->bqd"}> : () -> ()
    %cst_20 = arith.constant dense<0.000000e+00> : vector<1x8x8xf32>
    %77 = tpu.matmul %74, %68, %cst_20 {dimension_numbers = #tpu.dot_dimension_numbers<[2], [1], [1], [2], [0, 0, 0, 1, 1, 2], [0], [0]>} : vector<1x8x8xf32>, vector<1x8x8xf32>, vector<1x8x8xf32> -> vector<1x8x8xf32>
    "tpu.trace_stop"() : () -> ()
    %78 = tpu.reciprocal %76 : vector<1x8x1xf32> -> vector<1x8x1xf32>
    %79 = vector.broadcast %78 : vector<1x8x1xf32> to vector<1x8x8xf32>
    %80 = arith.mulf %77, %79 : vector<1x8x8xf32>
    %81 = vector.shape_cast %80 : vector<1x8x8xf32> to vector<8x8xf32>
    %82 = tpu.concatenate %24, %43, %62, %81 in 1 : vector<8x8xf32>, vector<8x8xf32>, vector<8x8xf32>, vector<8x8xf32> -> vector<8x32xf32>
    %c0_21 = arith.constant 0 : index
    %c0_22 = arith.constant 0 : index
    %83 = vector.load %arg4[%c0_21, %c0_22] : memref<32x32xf32, #tpu.memory_space<vmem>>, vector<32x32xf32>
    %cst_23 = arith.constant dense<0.000000e+00> : vector<8x32xf32>
    %84 = tpu.matmul %82, %83, %cst_23 {dimension_numbers = #tpu.dot_dimension_numbers<[1], [0], [0], [1], [0, 0, 1, 1], [], []>} : vector<8x32xf32>, vector<32x32xf32>, vector<8x32xf32> -> vector<8x32xf32>
    %c0_24 = arith.constant 0 : index
    %c0_25 = arith.constant 0 : index
    %85 = vector.load %arg5[%c0_24, %c0_25] : memref<1x32xf32, #tpu.memory_space<vmem>>, vector<1x32xf32>
    %86 = vector.broadcast %85 : vector<1x32xf32> to vector<8x32xf32>
    %87 = arith.addf %84, %86 : vector<8x32xf32>
    %88 = arith.addf %0, %87 : vector<8x32xf32>
    %c0_26 = arith.constant 0 : index
    %c0_27 = arith.constant 0 : index
    %89 = vector.load %arg10[%c0_26, %c0_27] : memref<1x32xf32, #tpu.memory_space<vmem>>, vector<1x32xf32>
    %c0_28 = arith.constant 0 : index
    %c0_29 = arith.constant 0 : index
    %90 = vector.load %arg11[%c0_28, %c0_29] : memref<1x32xf32, #tpu.memory_space<vmem>>, vector<1x32xf32>
    %cst_30 = arith.constant dense<0.000000e+00> : vector<8xf32>
    %91 = vector.multi_reduction <add>, %88, %cst_30 [1] : vector<8x32xf32> to vector<8xf32>
    %92 = vector.shape_cast %91 : vector<8xf32> to vector<8x1xf32>
    %cst_31 = arith.constant 3.200000e+01 : f32
    %93 = vector.broadcast %cst_31 : f32 to vector<8x1xf32>
    %94 = arith.divf %92, %93 : vector<8x1xf32>
    %95 = vector.broadcast %94 : vector<8x1xf32> to vector<8x32xf32>
    %96 = arith.subf %88, %95 : vector<8x32xf32>
    %97 = arith.mulf %96, %96 : vector<8x32xf32>
    %cst_32 = arith.constant dense<0.000000e+00> : vector<8xf32>
    %98 = vector.multi_reduction <add>, %97, %cst_32 [1] : vector<8x32xf32> to vector<8xf32>
    %99 = vector.shape_cast %98 : vector<8xf32> to vector<8x1xf32>
    %cst_33 = arith.constant 3.200000e+01 : f32
    %100 = vector.broadcast %cst_33 : f32 to vector<8x1xf32>
    %101 = arith.divf %99, %100 : vector<8x1xf32>
    %102 = vector.broadcast %94 : vector<8x1xf32> to vector<8x32xf32>
    %103 = arith.subf %88, %102 : vector<8x32xf32>
    %cst_34 = arith.constant 9.99999974E-6 : f32
    %104 = vector.broadcast %cst_34 : f32 to vector<8x1xf32>
    %105 = arith.addf %101, %104 : vector<8x1xf32>
    %106 = math.rsqrt %105 : vector<8x1xf32>
    %107 = vector.broadcast %106 : vector<8x1xf32> to vector<8x32xf32>
    %108 = arith.mulf %103, %107 : vector<8x32xf32>
    %109 = vector.broadcast %89 : vector<1x32xf32> to vector<8x32xf32>
    %110 = arith.mulf %108, %109 : vector<8x32xf32>
    %111 = vector.broadcast %90 : vector<1x32xf32> to vector<8x32xf32>
    %112 = arith.addf %110, %111 : vector<8x32xf32>
    %c0_35 = arith.constant 0 : index
    %c0_36 = arith.constant 0 : index
    %113 = vector.load %arg6[%c0_35, %c0_36] : memref<32x64xf32, #tpu.memory_space<vmem>>, vector<32x64xf32>
    %cst_37 = arith.constant dense<0.000000e+00> : vector<8x64xf32>
    %114 = tpu.matmul %112, %113, %cst_37 {dimension_numbers = #tpu.dot_dimension_numbers<[1], [0], [0], [1], [0, 0, 1, 1], [], []>} : vector<8x32xf32>, vector<32x64xf32>, vector<8x64xf32> -> vector<8x64xf32>
    %c0_38 = arith.constant 0 : index
    %c0_39 = arith.constant 0 : index
    %115 = vector.load %arg7[%c0_38, %c0_39] : memref<1x64xf32, #tpu.memory_space<vmem>>, vector<1x64xf32>
    %116 = vector.broadcast %115 : vector<1x64xf32> to vector<8x64xf32>
    %117 = arith.addf %114, %116 : vector<8x64xf32>
    %cst_40 = arith.constant 0.000000e+00 : f32
    %118 = vector.broadcast %cst_40 : f32 to vector<8x64xf32>
    %119 = arith.maximumf %117, %118 : vector<8x64xf32>
    %c0_41 = arith.constant 0 : index
    %c0_42 = arith.constant 0 : index
    %120 = vector.load %arg8[%c0_41, %c0_42] : memref<64x32xf32, #tpu.memory_space<vmem>>, vector<64x32xf32>
    %cst_43 = arith.constant dense<0.000000e+00> : vector<8x32xf32>
    %121 = tpu.matmul %119, %120, %cst_43 {dimension_numbers = #tpu.dot_dimension_numbers<[1], [0], [0], [1], [0, 0, 1, 1], [], []>} : vector<8x64xf32>, vector<64x32xf32>, vector<8x32xf32> -> vector<8x32xf32>
    %c0_44 = arith.constant 0 : index
    %c0_45 = arith.constant 0 : index
    %122 = vector.load %arg9[%c0_44, %c0_45] : memref<1x32xf32, #tpu.memory_space<vmem>>, vector<1x32xf32>
    %123 = vector.broadcast %122 : vector<1x32xf32> to vector<8x32xf32>
    %124 = arith.addf %121, %123 : vector<8x32xf32>
    %125 = arith.addf %112, %124 : vector<8x32xf32>
    %c0_46 = arith.constant 0 : index
    %c0_47 = arith.constant 0 : index
    %126 = vector.load %arg12[%c0_46, %c0_47] : memref<1x32xf32, #tpu.memory_space<vmem>>, vector<1x32xf32>
    %c0_48 = arith.constant 0 : index
    %c0_49 = arith.constant 0 : index
    %127 = vector.load %arg13[%c0_48, %c0_49] : memref<1x32xf32, #tpu.memory_space<vmem>>, vector<1x32xf32>
    %cst_50 = arith.constant dense<0.000000e+00> : vector<8xf32>
    %128 = vector.multi_reduction <add>, %125, %cst_50 [1] : vector<8x32xf32> to vector<8xf32>
    %129 = vector.shape_cast %128 : vector<8xf32> to vector<8x1xf32>
    %cst_51 = arith.constant 3.200000e+01 : f32
    %130 = vector.broadcast %cst_51 : f32 to vector<8x1xf32>
    %131 = arith.divf %129, %130 : vector<8x1xf32>
    %132 = vector.broadcast %131 : vector<8x1xf32> to vector<8x32xf32>
    %133 = arith.subf %125, %132 : vector<8x32xf32>
    %134 = arith.mulf %133, %133 : vector<8x32xf32>
    %cst_52 = arith.constant dense<0.000000e+00> : vector<8xf32>
    %135 = vector.multi_reduction <add>, %134, %cst_52 [1] : vector<8x32xf32> to vector<8xf32>
    %136 = vector.shape_cast %135 : vector<8xf32> to vector<8x1xf32>
    %cst_53 = arith.constant 3.200000e+01 : f32
    %137 = vector.broadcast %cst_53 : f32 to vector<8x1xf32>
    %138 = arith.divf %136, %137 : vector<8x1xf32>
    %139 = vector.broadcast %131 : vector<8x1xf32> to vector<8x32xf32>
    %140 = arith.subf %125, %139 : vector<8x32xf32>
    %cst_54 = arith.constant 9.99999974E-6 : f32
    %141 = vector.broadcast %cst_54 : f32 to vector<8x1xf32>
    %142 = arith.addf %138, %141 : vector<8x1xf32>
    %143 = math.rsqrt %142 : vector<8x1xf32>
    %144 = vector.broadcast %143 : vector<8x1xf32> to vector<8x32xf32>
    %145 = arith.mulf %140, %144 : vector<8x32xf32>
    %146 = vector.broadcast %126 : vector<1x32xf32> to vector<8x32xf32>
    %147 = arith.mulf %145, %146 : vector<8x32xf32>
    %148 = vector.broadcast %127 : vector<1x32xf32> to vector<8x32xf32>
    %149 = arith.addf %147, %148 : vector<8x32xf32>
    %c0_55 = arith.constant 0 : index
    %c0_56 = arith.constant 0 : index
    %150 = vector.load %arg14[%c0_55, %c0_56] : memref<8x32xf32, #tpu.memory_space<vmem>>, vector<8x32xf32>
    tpu.vector_store %arg14[%c0_55, %c0_56], %149 {strides = array<i32>} : memref<8x32xf32, #tpu.memory_space<vmem>>, vector<8x32xf32>,
    return
  }
  func.func @transform_0(%arg0: i32) -> (i32, i32) {
    %c0_i32 = arith.constant 0 : i32
    %c0_i32_0 = arith.constant 0 : i32
    return %arg0, %c0_i32 : i32, i32
  }
  func.func @transform_1(%arg0: i32) -> (i32, i32) {
    %c0_i32 = arith.constant 0 : i32
    %c0_i32_0 = arith.constant 0 : i32
    %c0_i32_1 = arith.constant 0 : i32
    return %c0_i32, %c0_i32_0 : i32, i32
  }
  func.func @transform_2(%arg0: i32) -> (i32, i32) {
    %c0_i32 = arith.constant 0 : i32
    %c0_i32_0 = arith.constant 0 : i32
    %c0_i32_1 = arith.constant 0 : i32
    return %c0_i32, %c0_i32_0 : i32, i32
  }
  func.func @transform_3(%arg0: i32) -> (i32, i32) {
    %c0_i32 = arith.constant 0 : i32
    %c0_i32_0 = arith.constant 0 : i32
    %c0_i32_1 = arith.constant 0 : i32
    return %c0_i32, %c0_i32_0 : i32, i32
  }
  func.func @transform_4(%arg0: i32) -> (i32, i32) {
    %c0_i32 = arith.constant 0 : i32
    %c0_i32_0 = arith.constant 0 : i32
    %c0_i32_1 = arith.constant 0 : i32
    return %c0_i32, %c0_i32_0 : i32, i32
  }
  func.func @transform_5(%arg0: i32) -> (i32, i32) {
    %c0_i32 = arith.constant 0 : i32
    %c0_i32_0 = arith.constant 0 : i32
    %c0_i32_1 = arith.constant 0 : i32
    return %c0_i32, %c0_i32_0 : i32, i32
  }
  func.func @transform_6(%arg0: i32) -> (i32, i32) {
    %c0_i32 = arith.constant 0 : i32
    %c0_i32_0 = arith.constant 0 : i32
    %c0_i32_1 = arith.constant 0 : i32
    return %c0_i32, %c0_i32_0 : i32, i32
  }
  func.func @transform_7(%arg0: i32) -> (i32, i32) {
    %c0_i32 = arith.constant 0 : i32
    %c0_i32_0 = arith.constant 0 : i32
    %c0_i32_1 = arith.constant 0 : i32
    return %c0_i32, %c0_i32_0 : i32, i32
  }
  func.func @transform_8(%arg0: i32) -> (i32, i32) {
    %c0_i32 = arith.constant 0 : i32
    %c0_i32_0 = arith.constant 0 : i32
    %c0_i32_1 = arith.constant 0 : i32
    return %c0_i32, %c0_i32_0 : i32, i32
  }
  func.func @transform_9(%arg0: i32) -> (i32, i32) {
    %c0_i32 = arith.constant 0 : i32
    %c0_i32_0 = arith.constant 0 : i32
    %c0_i32_1 = arith.constant 0 : i32
    return %c0_i32, %c0_i32_0 : i32, i32
  }
  func.func @transform_10(%arg0: i32) -> (i32, i32) {
    %c0_i32 = arith.constant 0 : i32
    %c0_i32_0 = arith.constant 0 : i32
    %c0_i32_1 = arith.constant 0 : i32
    return %c0_i32, %c0_i32_0 : i32, i32
  }
  func.func @transform_11(%arg0: i32) -> (i32, i32) {
    %c0_i32 = arith.constant 0 : i32
    %c0_i32_0 = arith.constant 0 : i32
    %c0_i32_1 = arith.constant 0 : i32
    return %c0_i32, %c0_i32_0 : i32, i32
  }
  func.func @transform_12(%arg0: i32) -> (i32, i32) {
    %c0_i32 = arith.constant 0 : i32
    %c0_i32_0 = arith.constant 0 : i32
    %c0_i32_1 = arith.constant 0 : i32
    return %c0_i32, %c0_i32_0 : i32, i32
  }
  func.func @transform_13(%arg0: i32) -> (i32, i32) {
    %c0_i32 = arith.constant 0 : i32
    %c0_i32_0 = arith.constant 0 : i32
    return %arg0, %c0_i32 : i32, i32
  }
}

module attributes {stable_mosaic.version = 11 : i64} {
  func.func @_encoder_block_kernel(%arg0: i32, %arg1: memref<8x32xf32, #tpu.memory_space<vmem>>, %arg2: memref<32x96xf32, #tpu.memory_space<vmem>>, %arg3: memref<1x96xf32, #tpu.memory_space<vmem>>, %arg4: memref<32x32xf32, #tpu.memory_space<vmem>>, %arg5: memref<1x32xf32, #tpu.memory_space<vmem>>, %arg6: memref<32x64xf32, #tpu.memory_space<vmem>>, %arg7: memref<1x64xf32, #tpu.memory_space<vmem>>, %arg8: memref<64x32xf32, #tpu.memory_space<vmem>>, %arg9: memref<1x32xf32, #tpu.memory_space<vmem>>, %arg10: memref<1x32xf32, #tpu.memory_space<vmem>>, %arg11: memref<1x32xf32, #tpu.memory_space<vmem>>, %arg12: memref<1x32xf32, #tpu.memory_space<vmem>>, %arg13: memref<1x32xf32, #tpu.memory_space<vmem>>, %arg14: memref<8x32xf32, #tpu.memory_space<vmem>>) attributes {dimension_semantics = [#tpu.dimension_semantics<parallel>], iteration_bounds = array<i64: 2>, scalar_prefetch = 0 : i64, scratch_operands = 0 : i64, tpu.core_type = #tpu.core_type<tc>, window_params = [{transform_indices = @transform_0, window_bounds = array<i64: 8, 32>}, {pipeline_mode = #tpu.pipeline_mode<synchronous>, transform_indices = @transform_1, window_bounds = array<i64: 32, 96>}, {pipeline_mode = #tpu.pipeline_mode<synchronous>, transform_indices = @transform_2, window_bounds = array<i64: 1, 96>}, {pipeline_mode = #tpu.pipeline_mode<synchronous>, transform_indices = @transform_3, window_bounds = array<i64: 32, 32>}, {pipeline_mode = #tpu.pipeline_mode<synchronous>, transform_indices = @transform_4, window_bounds = array<i64: 1, 32>}, {pipeline_mode = #tpu.pipeline_mode<synchronous>, transform_indices = @transform_5, window_bounds = array<i64: 32, 64>}, {pipeline_mode = #tpu.pipeline_mode<synchronous>, transform_indices = @transform_6, window_bounds = array<i64: 1, 64>}, {pipeline_mode = #tpu.pipeline_mode<synchronous>, transform_indices = @transform_7, window_bounds = array<i64: 64, 32>}, {pipeline_mode = #tpu.pipeline_mode<synchronous>, transform_indices = @transform_8, window_bounds = array<i64: 1, 32>}, {pipeline_mode = #tpu.pipeline_mode<synchronous>, transform_indices = @transform_9, window_bounds = array<i64: 1, 32>}, {pipeline_mode = #tpu.pipeline_mode<synchronous>, transform_indices = @transform_10, window_bounds = array<i64: 1, 32>}, {pipeline_mode = #tpu.pipeline_mode<synchronous>, transform_indices = @transform_11, window_bounds = array<i64: 1, 32>}, {pipeline_mode = #tpu.pipeline_mode<synchronous>, transform_indices = @transform_12, window_bounds = array<i64: 1, 32>}, {transform_indices = @transform_13, window_bounds = array<i64: 8, 32>}]} {
    %c0 = arith.constant 0 : index
    %c0_0 = arith.constant 0 : index
    %0 = vector.load %arg1[%c0, %c0_0] : memref<8x32xf32, #tpu.memory_space<vmem>>, vector<8x32xf32>
    %c0_1 = arith.constant 0 : index
    %c0_2 = arith.constant 0 : index
    %1 = vector.load %arg2[%c0_1, %c0_2] : memref<32x96xf32, #tpu.memory_space<vmem>>, vector<32x96xf32>
    %cst = arith.constant dense<0.000000e+00> : vector<8x96xf32>
    %2 = tpu.matmul %0, %1, %cst {dimension_numbers = #tpu.dot_dimension_numbers<[1], [0], [0], [1], [0, 0, 1, 1], [], []>} : vector<8x32xf32>, vector<32x96xf32>, vector<8x96xf32> -> vector<8x96xf32>
    %c0_3 = arith.constant 0 : index
    %c0_4 = arith.constant 0 : index
    %3 = vector.load %arg3[%c0_3, %c0_4] : memref<1x96xf32, #tpu.memory_space<vmem>>, vector<1x96xf32>
    %4 = vector.broadcast %3 : vector<1x96xf32> to vector<8x96xf32>
    %5 = arith.addf %2, %4 : vector<8x96xf32>
    %6 = vector.extract_strided_slice %5 {offsets = [0, 0], sizes = [8, 8], strides = [1, 1]} : vector<8x96xf32> to vector<8x8xf32>
    %7 = vector.shape_cast %6 : vector<8x8xf32> to vector<1x8x8xf32>
    %8 = vector.extract_strided_slice %5 {offsets = [0, 32], sizes = [8, 8], strides = [1, 1]} : vector<8x96xf32> to vector<8x8xf32>
    %9 = vector.shape_cast %8 : vector<8x8xf32> to vector<1x8x8xf32>
    %10 = vector.extract_strided_slice %5 {offsets = [0, 64], sizes = [8, 8], strides = [1, 1]} : vector<8x96xf32> to vector<8x8xf32>
    %11 = vector.shape_cast %10 : vector<8x8xf32> to vector<1x8x8xf32>
    "tpu.trace_start"() <{level = 10 : i32, message = "bqd,bkd->bqk"}> : () -> ()
    %cst_5 = arith.constant dense<0.000000e+00> : vector<1x8x8xf32>
    %12 = tpu.matmul %7, %9, %cst_5 {dimension_numbers = #tpu.dot_dimension_numbers<[2], [2], [1], [1], [0, 0, 0, 1, 1, 1], [0], [0]>} : vector<1x8x8xf32>, vector<1x8x8xf32>, vector<1x8x8xf32> -> vector<1x8x8xf32>
    "tpu.trace_stop"() : () -> ()
    %cst_6 = arith.constant dense<0xFF800000> : vector<1x8xf32>
    %13 = vector.multi_reduction <maximumf>, %12, %cst_6 [2] : vector<1x8x8xf32> to vector<1x8xf32>
    %14 = vector.shape_cast %13 : vector<1x8xf32> to vector<1x8x1xf32>
    %15 = vector.broadcast %14 : vector<1x8x1xf32> to vector<1x8x8xf32>
    %16 = arith.subf %12, %15 : vector<1x8x8xf32>
    %17 = math.exp %16 : vector<1x8x8xf32>
    %cst_7 = arith.constant dense<0.000000e+00> : vector<1x8xf32>
    %18 = vector.multi_reduction <add>, %17, %cst_7 [2] : vector<1x8x8xf32> to vector<1x8xf32>
    %19 = vector.shape_cast %18 : vector<1x8xf32> to vector<1x8x1xf32>
    "tpu.trace_start"() <{level = 10 : i32, message = "bqk,bkd->bqd"}> : () -> ()
    %cst_8 = arith.constant dense<0.000000e+00> : vector<1x8x8xf32>
    %20 = tpu.matmul %17, %11, %cst_8 {dimension_numbers = #tpu.dot_dimension_numbers<[2], [1], [1], [2], [0, 0, 0, 1, 1, 2], [0], [0]>} : vector<1x8x8xf32>, vector<1x8x8xf32>, vector<1x8x8xf32> -> vector<1x8x8xf32>
    "tpu.trace_stop"() : () -> ()
    %21 = tpu.reciprocal %19 : vector<1x8x1xf32> -> vector<1x8x1xf32>
    %22 = vector.broadcast %21 : vector<1x8x1xf32> to vector<1x8x8xf32>
    %23 = arith.mulf %20, %22 : vector<1x8x8xf32>
    %24 = vector.shape_cast %23 : vector<1x8x8xf32> to vector<8x8xf32>
    %25 = vector.extract_strided_slice %5 {offsets = [0, 8], sizes = [8, 8], strides = [1, 1]} : vector<8x96xf32> to vector<8x8xf32>
    %26 = vector.shape_cast %25 : vector<8x8xf32> to vector<1x8x8xf32>
    %27 = vector.extract_strided_slice %5 {offsets = [0, 40], sizes = [8, 8], strides = [1, 1]} : vector<8x96xf32> to vector<8x8xf32>
    %28 = vector.shape_cast %27 : vector<8x8xf32> to vector<1x8x8xf32>
    %29 = vector.extract_strided_slice %5 {offsets = [0, 72], sizes = [8, 8], strides = [1, 1]} : vector<8x96xf32> to vector<8x8xf32>
    %30 = vector.shape_cast %29 : vector<8x8xf32> to vector<1x8x8xf32>
    "tpu.trace_start"() <{level = 10 : i32, message = "bqd,bkd->bqk"}> : () -> ()
    %cst_9 = arith.constant dense<0.000000e+00> : vector<1x8x8xf32>
    %31 = tpu.matmul %26, %28, %cst_9 {dimension_numbers = #tpu.dot_dimension_numbers<[2], [2], [1], [1], [0, 0, 0, 1, 1, 1], [0], [0]>} : vector<1x8x8xf32>, vector<1x8x8xf32>, vector<1x8x8xf32> -> vector<1x8x8xf32>
    "tpu.trace_stop"() : () -> ()
    %cst_10 = arith.constant dense<0xFF800000> : vector<1x8xf32>
    %32 = vector.multi_reduction <maximumf>, %31, %cst_10 [2] : vector<1x8x8xf32> to vector<1x8xf32>
    %33 = vector.shape_cast %32 : vector<1x8xf32> to vector<1x8x1xf32>
    %34 = vector.broadcast %33 : vector<1x8x1xf32> to vector<1x8x8xf32>
    %35 = arith.subf %31, %34 : vector<1x8x8xf32>
    %36 = math.exp %35 : vector<1x8x8xf32>
    %cst_11 = arith.constant dense<0.000000e+00> : vector<1x8xf32>
    %37 = vector.multi_reduction <add>, %36, %cst_11 [2] : vector<1x8x8xf32> to vector<1x8xf32>
    %38 = vector.shape_cast %37 : vector<1x8xf32> to vector<1x8x1xf32>
    "tpu.trace_start"() <{level = 10 : i32, message = "bqk,bkd->bqd"}> : () -> ()
    %cst_12 = arith.constant dense<0.000000e+00> : vector<1x8x8xf32>
    %39 = tpu.matmul %36, %30, %cst_12 {dimension_numbers = #tpu.dot_dimension_numbers<[2], [1], [1], [2], [0, 0, 0, 1, 1, 2], [0], [0]>} : vector<1x8x8xf32>, vector<1x8x8xf32>, vector<1x8x8xf32> -> vector<1x8x8xf32>
    "tpu.trace_stop"() : () -> ()
    %40 = tpu.reciprocal %38 : vector<1x8x1xf32> -> vector<1x8x1xf32>
    %41 = vector.broadcast %40 : vector<1x8x1xf32> to vector<1x8x8xf32>
    %42 = arith.mulf %39, %41 : vector<1x8x8xf32>
    %43 = vector.shape_cast %42 : vector<1x8x8xf32> to vector<8x8xf32>
    %44 = vector.extract_strided_slice %5 {offsets = [0, 16], sizes = [8, 8], strides = [1, 1]} : vector<8x96xf32> to vector<8x8xf32>
    %45 = vector.shape_cast %44 : vector<8x8xf32> to vector<1x8x8xf32>
    %46 = vector.extract_strided_slice %5 {offsets = [0, 48], sizes = [8, 8], strides = [1, 1]} : vector<8x96xf32> to vector<8x8xf32>
    %47 = vector.shape_cast %46 : vector<8x8xf32> to vector<1x8x8xf32>
    %48 = vector.extract_strided_slice %5 {offsets = [0, 80], sizes = [8, 8], strides = [1, 1]} : vector<8x96xf32> to vector<8x8xf32>
    %49 = vector.shape_cast %48 : vector<8x8xf32> to vector<1x8x8xf32>
    "tpu.trace_start"() <{level = 10 : i32, message = "bqd,bkd->bqk"}> : () -> ()
    %cst_13 = arith.constant dense<0.000000e+00> : vector<1x8x8xf32>
    %50 = tpu.matmul %45, %47, %cst_13 {dimension_numbers = #tpu.dot_dimension_numbers<[2], [2], [1], [1], [0, 0, 0, 1, 1, 1], [0], [0]>} : vector<1x8x8xf32>, vector<1x8x8xf32>, vector<1x8x8xf32> -> vector<1x8x8xf32>
    "tpu.trace_stop"() : () -> ()
    %cst_14 = arith.constant dense<0xFF800000> : vector<1x8xf32>
    %51 = vector.multi_reduction <maximumf>, %50, %cst_14 [2] : vector<1x8x8xf32> to vector<1x8xf32>
    %52 = vector.shape_cast %51 : vector<1x8xf32> to vector<1x8x1xf32>
    %53 = vector.broadcast %52 : vector<1x8x1xf32> to vector<1x8x8xf32>
    %54 = arith.subf %50, %53 : vector<1x8x8xf32>
    %55 = math.exp %54 : vector<1x8x8xf32>
    %cst_15 = arith.constant dense<0.000000e+00> : vector<1x8xf32>
    %56 = vector.multi_reduction <add>, %55, %cst_15 [2] : vector<1x8x8xf32> to vector<1x8xf32>
    %57 = vector.shape_cast %56 : vector<1x8xf32> to vector<1x8x1xf32>
    "tpu.trace_start"() <{level = 10 : i32, message = "bqk,bkd->bqd"}> : () -> ()
    %cst_16 = arith.constant dense<0.000000e+00> : vector<1x8x8xf32>
    %58 = tpu.matmul %55, %49, %cst_16 {dimension_numbers = #tpu.dot_dimension_numbers<[2], [1], [1], [2], [0, 0, 0, 1, 1, 2], [0], [0]>} : vector<1x8x8xf32>, vector<1x8x8xf32>, vector<1x8x8xf32> -> vector<1x8x8xf32>
    "tpu.trace_stop"() : () -> ()
    %59 = tpu.reciprocal %57 : vector<1x8x1xf32> -> vector<1x8x1xf32>
    %60 = vector.broadcast %59 : vector<1x8x1xf32> to vector<1x8x8xf32>
    %61 = arith.mulf %58, %60 : vector<1x8x8xf32>
    %62 = vector.shape_cast %61 : vector<1x8x8xf32> to vector<8x8xf32>
    %63 = vector.extract_strided_slice %5 {offsets = [0, 24], sizes = [8, 8], strides = [1, 1]} : vector<8x96xf32> to vector<8x8xf32>
    %64 = vector.shape_cast %63 : vector<8x8xf32> to vector<1x8x8xf32>
    %65 = vector.extract_strided_slice %5 {offsets = [0, 56], sizes = [8, 8], strides = [1, 1]} : vector<8x96xf32> to vector<8x8xf32>
    %66 = vector.shape_cast %65 : vector<8x8xf32> to vector<1x8x8xf32>
    %67 = vector.extract_strided_slice %5 {offsets = [0, 88], sizes = [8, 8], strides = [1, 1]} : vector<8x96xf32> to vector<8x8xf32>
    %68 = vector.shape_cast %67 : vector<8x8xf32> to vector<1x8x8xf32>
    "tpu.trace_start"() <{level = 10 : i32, message = "bqd,bkd->bqk"}> : () -> ()
    %cst_17 = arith.constant dense<0.000000e+00> : vector<1x8x8xf32>
    %69 = tpu.matmul %64, %66, %cst_17 {dimension_numbers = #tpu.dot_dimension_numbers<[2], [2], [1], [1], [0, 0, 0, 1, 1, 1], [0], [0]>} : vector<1x8x8xf32>, vector<1x8x8xf32>, vector<1x8x8xf32> -> vector<1x8x8xf32>
    "tpu.trace_stop"() : () -> ()
    %cst_18 = arith.constant dense<0xFF800000> : vector<1x8xf32>
    %70 = vector.multi_reduction <maximumf>, %69, %cst_18 [2] : vector<1x8x8xf32> to vector<1x8xf32>
    %71 = vector.shape_cast %70 : vector<1x8xf32> to vector<1x8x1xf32>
    %72 = vector.broadcast %71 : vector<1x8x1xf32> to vector<1x8x8xf32>
    %73 = arith.subf %69, %72 : vector<1x8x8xf32>
    %74 = math.exp %73 : vector<1x8x8xf32>
    %cst_19 = arith.constant dense<0.000000e+00> : vector<1x8xf32>
    %75 = vector.multi_reduction <add>, %74, %cst_19 [2] : vector<1x8x8xf32> to vector<1x8xf32>
    %76 = vector.shape_cast %75 : vector<1x8xf32> to vector<1x8x1xf32>
    "tpu.trace_start"() <{level = 10 : i32, message = "bqk,bkd->bqd"}> : () -> ()
    %cst_20 = arith.constant dense<0.000000e+00> : vector<1x8x8xf32>
    %77 = tpu.matmul %74, %68, %cst_20 {dimension_numbers = #tpu.dot_dimension_numbers<[2], [1], [1], [2], [0, 0, 0, 1, 1, 2], [0], [0]>} : vector<1x8x8xf32>, vector<1x8x8xf32>, vector<1x8x8xf32> -> vector<1x8x8xf32>
    "tpu.trace_stop"() : () -> ()
    %78 = tpu.reciprocal %76 : vector<1x8x1xf32> -> vector<1x8x1xf32>
    %79 = vector.broadcast %78 : vector<1x8x1xf32> to vector<1x8x8xf32>
    %80 = arith.mulf %77, %79 : vector<1x8x8xf32>
    %81 = vector.shape_cast %80 : vector<1x8x8xf32> to vector<8x8xf32>
    %82 = tpu.concatenate %24, %43, %62, %81 in 1 : vector<8x8xf32>, vector<8x8xf32>, vector<8x8xf32>, vector<8x8xf32> -> vector<8x32xf32>
    %c0_21 = arith.constant 0 : index
    %c0_22 = arith.constant 0 : index
    %83 = vector.load %arg4[%c0_21, %c0_22] : memref<32x32xf32, #tpu.memory_space<vmem>>, vector<32x32xf32>
    %cst_23 = arith.constant dense<0.000000e+00> : vector<8x32xf32>
    %84 = tpu.matmul %82, %83, %cst_23 {dimension_numbers = #tpu.dot_dimension_numbers<[1], [0], [0], [1], [0, 0, 1, 1], [], []>} : vector<8x32xf32>, vector<32x32xf32>, vector<8x32xf32> -> vector<8x32xf32>
    %c0_24 = arith.constant 0 : index
    %c0_25 = arith.constant 0 : index
    %85 = vector.load %arg5[%c0_24, %c0_25] : memref<1x32xf32, #tpu.memory_space<vmem>>, vector<1x32xf32>
    %86 = vector.broadcast %85 : vector<1x32xf32> to vector<8x32xf32>
    %87 = arith.addf %84, %86 : vector<8x32xf32>
    %88 = arith.addf %0, %87 : vector<8x32xf32>
    %c0_26 = arith.constant 0 : index
    %c0_27 = arith.constant 0 : index
    %89 = vector.load %arg10[%c0_26, %c0_27] : memref<1x32xf32, #tpu.memory_space<vmem>>, vector<1x32xf32>
    %c0_28 = arith.constant 0 : index
    %c0_29 = arith.constant 0 : index
    %90 = vector.load %arg11[%c0_28, %c0_29] : memref<1x32xf32, #tpu.memory_space<vmem>>, vector<1x32xf32>
    %cst_30 = arith.constant dense<0.000000e+00> : vector<8xf32>
    %91 = vector.multi_reduction <add>, %88, %cst_30 [1] : vector<8x32xf32> to vector<8xf32>
    %92 = vector.shape_cast %91 : vector<8xf32> to vector<8x1xf32>
    %cst_31 = arith.constant 3.200000e+01 : f32
    %93 = vector.broadcast %cst_31 : f32 to vector<8x1xf32>
    %94 = arith.divf %92, %93 : vector<8x1xf32>
    %95 = vector.broadcast %94 : vector<8x1xf32> to vector<8x32xf32>
    %96 = arith.subf %88, %95 : vector<8x32xf32>
    %97 = arith.mulf %96, %96 : vector<8x32xf32>
    %cst_32 = arith.constant dense<0.000000e+00> : vector<8xf32>
    %98 = vector.multi_reduction <add>, %97, %cst_32 [1] : vector<8x32xf32> to vector<8xf32>
    %99 = vector.shape_cast %98 : vector<8xf32> to vector<8x1xf32>
    %cst_33 = arith.constant 3.200000e+01 : f32
    %100 = vector.broadcast %cst_33 : f32 to vector<8x1xf32>
    %101 = arith.divf %99, %100 : vector<8x1xf32>
    %102 = vector.broadcast %94 : vector<8x1xf32> to vector<8x32xf32>
    %103 = arith.subf %88, %102 : vector<8x32xf32>
    %cst_34 = arith.constant 9.99999974E-6 : f32
    %104 = vector.broadcast %cst_34 : f32 to vector<8x1xf32>
    %105 = arith.addf %101, %104 : vector<8x1xf32>
    %106 = math.rsqrt %105 : vector<8x1xf32>
    %107 = vector.broadcast %106 : vector<8x1xf32> to vector<8x32xf32>
    %108 = arith.mulf %103, %107 : vector<8x32xf32>
    %109 = vector.broadcast %89 : vector<1x32xf32> to vector<8x32xf32>
    %110 = arith.mulf %108, %109 : vector<8x32xf32>
    %111 = vector.broadcast %90 : vector<1x32xf32> to vector<8x32xf32>
    %112 = arith.addf %110, %111 : vector<8x32xf32>
    %c0_35 = arith.constant 0 : index
    %c0_36 = arith.constant 0 : index
    %113 = vector.load %arg6[%c0_35, %c0_36] : memref<32x64xf32, #tpu.memory_space<vmem>>, vector<32x64xf32>
    %cst_37 = arith.constant dense<0.000000e+00> : vector<8x64xf32>
    %114 = tpu.matmul %112, %113, %cst_37 {dimension_numbers = #tpu.dot_dimension_numbers<[1], [0], [0], [1], [0, 0, 1, 1], [], []>} : vector<8x32xf32>, vector<32x64xf32>, vector<8x64xf32> -> vector<8x64xf32>
    %c0_38 = arith.constant 0 : index
    %c0_39 = arith.constant 0 : index
    %115 = vector.load %arg7[%c0_38, %c0_39] : memref<1x64xf32, #tpu.memory_space<vmem>>, vector<1x64xf32>
    %116 = vector.broadcast %115 : vector<1x64xf32> to vector<8x64xf32>
    %117 = arith.addf %114, %116 : vector<8x64xf32>
    %cst_40 = arith.constant 0.000000e+00 : f32
    %118 = vector.broadcast %cst_40 : f32 to vector<8x64xf32>
    %119 = arith.maximumf %117, %118 : vector<8x64xf32>
    %c0_41 = arith.constant 0 : index
    %c0_42 = arith.constant 0 : index
    %120 = vector.load %arg8[%c0_41, %c0_42] : memref<64x32xf32, #tpu.memory_space<vmem>>, vector<64x32xf32>
    %cst_43 = arith.constant dense<0.000000e+00> : vector<8x32xf32>
    %121 = tpu.matmul %119, %120, %cst_43 {dimension_numbers = #tpu.dot_dimension_numbers<[1], [0], [0], [1], [0, 0, 1, 1], [], []>} : vector<8x64xf32>, vector<64x32xf32>, vector<8x32xf32> -> vector<8x32xf32>
    %c0_44 = arith.constant 0 : index
    %c0_45 = arith.constant 0 : index
    %122 = vector.load %arg9[%c0_44, %c0_45] : memref<1x32xf32, #tpu.memory_space<vmem>>, vector<1x32xf32>
    %123 = vector.broadcast %122 : vector<1x32xf32> to vector<8x32xf32>
    %124 = arith.addf %121, %123 : vector<8x32xf32>
    %125 = arith.addf %112, %124 : vector<8x32xf32>
    %c0_46 = arith.constant 0 : index
    %c0_47 = arith.constant 0 : index
    %126 = vector.load %arg12[%c0_46, %c0_47] : memref<1x32xf32, #tpu.memory_space<vmem>>, vector<1x32xf32>
    %c0_48 = arith.constant 0 : index
    %c0_49 = arith.constant 0 : index
    %127 = vector.load %arg13[%c0_48, %c0_49] : memref<1x32xf32, #tpu.memory_space<vmem>>, vector<1x32xf32>
    %cst_50 = arith.constant dense<0.000000e+00> : vector<8xf32>
    %128 = vector.multi_reduction <add>, %125, %cst_50 [1] : vector<8x32xf32> to vector<8xf32>
    %129 = vector.shape_cast %128 : vector<8xf32> to vector<8x1xf32>
    %cst_51 = arith.constant 3.200000e+01 : f32
    %130 = vector.broadcast %cst_51 : f32 to vector<8x1xf32>
    %131 = arith.divf %129, %130 : vector<8x1xf32>
    %132 = vector.broadcast %131 : vector<8x1xf32> to vector<8x32xf32>
    %133 = arith.subf %125, %132 : vector<8x32xf32>
    %134 = arith.mulf %133, %133 : vector<8x32xf32>
    %cst_52 = arith.constant dense<0.000000e+00> : vector<8xf32>
    %135 = vector.multi_reduction <add>, %134, %cst_52 [1] : vector<8x32xf32> to vector<8xf32>
    %136 = vector.shape_cast %135 : vector<8xf32> to vector<8x1xf32>
    %cst_53 = arith.constant 3.200000e+01 : f32
    %137 = vector.broadcast %cst_53 : f32 to vector<8x1xf32>
    %138 = arith.divf %136, %137 : vector<8x1xf32>
    %139 = vector.broadcast %131 : vector<8x1xf32> to vector<8x32xf32>
    %140 = arith.subf %125, %139 : vector<8x32xf32>
    %cst_54 = arith.constant 9.99999974E-6 : f32
    %141 = vector.broadcast %cst_54 : f32 to vector<8x1xf32>
    %142 = arith.addf %138, %141 : vector<8x1xf32>
    %143 = math.rsqrt %142 : vector<8x1xf32>
    %144 = vector.broadcast %143 : vector<8x1xf32> to vector<8x32xf32>
    %145 = arith.mulf %140, %144 : vector<8x32xf32>
    %146 = vector.broadcast %126 : vector<1x32xf32> to vector<8x32xf32>
    %147 = arith.mulf %145, %146 : vector<8x32xf32>
    %148 = vector.broadcast %127 : vector<1x32xf32> to vector<8x32xf32>
    %149 = arith.addf %147, %148 : vector<8x32xf32>
    %c0_55 = arith.constant 0 : index
    %c0_56 = arith.constant 0 : index
    %150 = vector.load %arg14[%c0_55, %c0_56] : memref<8x32xf32, #tpu.memory_space<vmem>>, vector<8x32xf32>
    tpu.vector_store %arg14[%c0_55, %c0_56], %149 {strides = array<i32>} : memref<8x32xf32, #tpu.memory_space<vmem>>, vector<8x32xf32>,
    return
  }
  func.func @transform_0(%arg0: i32) -> (i32, i32) {
    %c0_i32 = arith.constant 0 : i32
    %c0_i32_0 = arith.constant 0 : i32
    return %arg0, %c0_i32 : i32, i32
  }
  func.func @transform_1(%arg0: i32) -> (i32, i32) {
    %c0_i32 = arith.constant 0 : i32
    %c0_i32_0 = arith.constant 0 : i32
    %c0_i32_1 = arith.constant 0 : i32
    return %c0_i32, %c0_i32_0 : i32, i32
  }
  func.func @transform_2(%arg0: i32) -> (i32, i32) {
    %c0_i32 = arith.constant 0 : i32
    %c0_i32_0 = arith.constant 0 : i32
    %c0_i32_1 = arith.constant 0 : i32
    return %c0_i32, %c0_i32_0 : i32, i32
  }
  func.func @transform_3(%arg0: i32) -> (i32, i32) {
    %c0_i32 = arith.constant 0 : i32
    %c0_i32_0 = arith.constant 0 : i32
    %c0_i32_1 = arith.constant 0 : i32
    return %c0_i32, %c0_i32_0 : i32, i32
  }
  func.func @transform_4(%arg0: i32) -> (i32, i32) {
    %c0_i32 = arith.constant 0 : i32
    %c0_i32_0 = arith.constant 0 : i32
    %c0_i32_1 = arith.constant 0 : i32
    return %c0_i32, %c0_i32_0 : i32, i32
  }
  func.func @transform_5(%arg0: i32) -> (i32, i32) {
    %c0_i32 = arith.constant 0 : i32
    %c0_i32_0 = arith.constant 0 : i32
    %c0_i32_1 = arith.constant 0 : i32
    return %c0_i32, %c0_i32_0 : i32, i32
  }
  func.func @transform_6(%arg0: i32) -> (i32, i32) {
    %c0_i32 = arith.constant 0 : i32
    %c0_i32_0 = arith.constant 0 : i32
    %c0_i32_1 = arith.constant 0 : i32
    return %c0_i32, %c0_i32_0 : i32, i32
  }
  func.func @transform_7(%arg0: i32) -> (i32, i32) {
    %c0_i32 = arith.constant 0 : i32
    %c0_i32_0 = arith.constant 0 : i32
    %c0_i32_1 = arith.constant 0 : i32
    return %c0_i32, %c0_i32_0 : i32, i32
  }
  func.func @transform_8(%arg0: i32) -> (i32, i32) {
    %c0_i32 = arith.constant 0 : i32
    %c0_i32_0 = arith.constant 0 : i32
    %c0_i32_1 = arith.constant 0 : i32
    return %c0_i32, %c0_i32_0 : i32, i32
  }
  func.func @transform_9(%arg0: i32) -> (i32, i32) {
    %c0_i32 = arith.constant 0 : i32
    %c0_i32_0 = arith.constant 0 : i32
    %c0_i32_1 = arith.constant 0 : i32
    return %c0_i32, %c0_i32_0 : i32, i32
  }
  func.func @transform_10(%arg0: i32) -> (i32, i32) {
    %c0_i32 = arith.constant 0 : i32
    %c0_i32_0 = arith.constant 0 : i32
    %c0_i32_1 = arith.constant 0 : i32
    return %c0_i32, %c0_i32_0 : i32, i32
  }
  func.func @transform_11(%arg0: i32) -> (i32, i32) {
    %c0_i32 = arith.constant 0 : i32
    %c0_i32_0 = arith.constant 0 : i32
    %c0_i32_1 = arith.constant 0 : i32
    return %c0_i32, %c0_i32_0 : i32, i32
  }
  func.func @transform_12(%arg0: i32) -> (i32, i32) {
    %c0_i32 = arith.constant 0 : i32
    %c0_i32_0 = arith.constant 0 : i32
    %c0_i32_1 = arith.constant 0 : i32
    return %c0_i32, %c0_i32_0 : i32, i32
  }
  func.func @transform_13(%arg0: i32) -> (i32, i32) {
    %c0_i32 = arith.constant 0 : i32
    %c0_i32_0 = arith.constant 0 : i32
    return %arg0, %c0_i32 : i32, i32
  }
}

</mosaic_0001>

<llo_original>
// kernel: tpu_custom_call.1
$region0: #{tpu_custom_call.1}
  #allocation0 [shape = 'u32[]', space=smem, size = 0x4, offset = 0x4, fixed_abs, tag = 'smem constant byte address 0x4 - core index']
  #allocation1 [shape = 'u32[72,128]{1,0:T(1,128)}', space=vmem, size = 0x9000, scoped, tag = 'internal scratch']
  %s0 = inlined_call_operand.hbm [shape: f32[16,32], index: 0, kind: input, shape index: {}]
  %s1 = inlined_call_operand.vmem [shape: f32[32,96], index: 1, kind: input, shape index: {}]
  %s2 = inlined_call_operand.vmem [shape: f32[1,96], index: 2, kind: input, shape index: {}]
  %s3 = inlined_call_operand.vmem [shape: f32[32,32], index: 3, kind: input, shape index: {}]
  %s4 = inlined_call_operand.vmem [shape: f32[1,32], index: 4, kind: input, shape index: {}]
  %s5 = inlined_call_operand.vmem [shape: f32[32,64], index: 5, kind: input, shape index: {}]
  %s6 = inlined_call_operand.vmem [shape: f32[1,64], index: 6, kind: input, shape index: {}]
  %s7 = inlined_call_operand.vmem [shape: f32[64,32], index: 7, kind: input, shape index: {}]
  %s8 = inlined_call_operand.vmem [shape: f32[1,32], index: 8, kind: input, shape index: {}]
  %s9 = inlined_call_operand.vmem [shape: f32[1,32], index: 9, kind: input, shape index: {}]
  %s10 = inlined_call_operand.vmem [shape: f32[1,32], index: 10, kind: input, shape index: {}]
  %s11 = inlined_call_operand.vmem [shape: f32[1,32], index: 11, kind: input, shape index: {}]
  %s12 = inlined_call_operand.vmem [shape: f32[1,32], index: 12, kind: input, shape index: {}]
  %s13 = inlined_call_operand.hbm [shape: f32[16,32], index: 13, kind: output, shape index: {}]
  %s14 = sld [smem:[#allocation0]]
  $region89: #{tpu_custom_call.1} parent=0
    _
  %s16 = ssub.s32 1, %s14
  %s17 = scalar_select 0, %s16, %s14
  $region1: #{tpu_custom_call.1} parent=0
    #allocation2 [shape = 'u8[8192]{0}', space=vmem, size = 0x2000, scoped, tag = 'input window, operand 0']
    #allocation3 [shape = 's32[2]{0}', space=sflag, size = 0x8, scoped, tag = 'scoped memory for tpu_custom_call.1']
    #allocation4 [shape = 's32[2]{0}', space=sflag, size = 0x8, scoped, tag = 'scoped memory for tpu_custom_call.1']
    #allocation5 [shape = 'u8[8192]{0}', space=vmem, size = 0x2000, scoped, tag = 'output window, operand 0']
    %18 = vsyncpa [#allocation3], 0
    %s19 = scalar_lea.sflag [#allocation3], 1
    %20 = vsyncpa %s19, 0
    %21 = vsyncpa [#allocation4], 0
    %s22 = scalar_lea.sflag [#allocation4], 1
    %23 = vsyncpa %s22, 0
    loop: start=0, step=1, limit=4
    $region2: #{tpu_custom_call.1} parent=1 // loop_pre_header
      _
    $region3: #{tpu_custom_call.1} parent=1 // loop_header
      %s25 = sphi 0, %s29
      %p26 = scmp.ge.s32.totalorder %s25, 4
      %s35 = sphi 0, %s37
      %s38 = sphi 0, %s35
      %s39 = sphi 0, %s38
      %s55 = sphi 0, %s39
      %s59 = sphi 0, %s59
      %s61 = sphi 0, %s59
      %s62 = sphi 0, %s61
      %s76 = sphi 0, %s62
      %s80 = sphi 0, %s80
      %s82 = sphi 0, %s80
      %s83 = sphi 0, %s82
      %s97 = sphi 0, %s83
      %s101 = sphi 0, %s101
      %s103 = sphi 0, %s101
      %s104 = sphi 0, %s103
      %s118 = sphi 0, %s104
      %s122 = sphi 0, %s122
      %s124 = sphi 0, %s122
      %s125 = sphi 0, %s124
      %s139 = sphi 0, %s125
      %s143 = sphi 0, %s143
      %s145 = sphi 0, %s143
      %s146 = sphi 0, %s145
      %s160 = sphi 0, %s146
      %s164 = sphi 0, %s164
      %s166 = sphi 0, %s164
      %s167 = sphi 0, %s166
      %s181 = sphi 0, %s167
      %s185 = sphi 0, %s185
      %s187 = sphi 0, %s185
      %s188 = sphi 0, %s187
      %s202 = sphi 0, %s188
      %s206 = sphi 0, %s206
      %s208 = sphi 0, %s206
      %s209 = sphi 0, %s208
      %s223 = sphi 0, %s209
      %s227 = sphi 0, %s227
      %s229 = sphi 0, %s227
      %s230 = sphi 0, %s229
      %s244 = sphi 0, %s230
      %s248 = sphi 0, %s248
      %s250 = sphi 0, %s248
      %s251 = sphi 0, %s250
      %s265 = sphi 0, %s251
      %s269 = sphi 0, %s269
      %s271 = sphi 0, %s269
      %s272 = sphi 0, %s271
      %s286 = sphi 0, %s272
      %s290 = sphi 0, %s290
      %s292 = sphi 0, %s290
      %s293 = sphi 0, %s292
      %s307 = sphi 0, %s293
      %s313 = sphi 0, %s315
      %s316 = sphi 0, %s313
      %s317 = sphi 0, %s316
      %s333 = sphi 0, %s317
    $region4: #{tpu_custom_call.1} parent=1 // loop_header_branch
      %28 = sbr.rel (%p26) target = $region8
    $region5: #{tpu_custom_call.1} parent=1 // loop_body
      %s30 = ssub.s32 %s25, 1
      %s31 = ssub.s32 %s25, 2
      %s32 = sadd.s32 %s25, 1
      %s33 = ssub.s32 %s25, %s32
      %p34 = scmp.eq.s32.totalorder %s33, 0
      %s36 = sadd.s32 %s35, 1
      %s37 = scalar_select %p34, %s35, %s36
      %p40 = pneg %p34
      %p41 = scmp.eq.s32.totalorder %s25, 1
      %p42 = por %p40, %p41
      %p43 = scmp.ne.s32.totalorder %s35, %s38
      %p44 = scmp.eq.s32.totalorder %s25, 0
      %p45 = por %p43, %p44
      %p46 = scmp.ne.s32.totalorder %s35, %s38
      %p47 = scmp.eq.s32.totalorder %s30, 1
      %p48 = por %p46, %p47
      %p49 = scmp.ne.s32.totalorder %s38, %s39
      %p50 = scmp.eq.s32.totalorder %s30, 0
      %p51 = por %p49, %p50
      %p52 = scmp.ne.s32.totalorder %s38, %s39
      %p53 = scmp.eq.s32.totalorder %s31, 1
      %p54 = por %p52, %p53
      %p56 = scmp.ne.s32.totalorder %s39, %s55
      %p57 = scmp.eq.s32.totalorder %s31, 0
      %p58 = por %p56, %p57
      %s60 = sadd.s32 %s59, 1
      %p63 = scmp.eq.s32.totalorder %s25, 1
      %p64 = scmp.ne.s32.totalorder %s59, %s61
      %p65 = scmp.eq.s32.totalorder %s25, 0
      %p66 = por %p64, %p65
      %p67 = scmp.ne.s32.totalorder %s59, %s61
      %p68 = scmp.eq.s32.totalorder %s30, 1
      %p69 = por %p67, %p68
      %p70 = scmp.ne.s32.totalorder %s61, %s62
      %p71 = scmp.eq.s32.totalorder %s30, 0
      %p72 = por %p70, %p71
      %p73 = scmp.ne.s32.totalorder %s61, %s62
      %p74 = scmp.eq.s32.totalorder %s31, 1
      %p75 = por %p73, %p74
      %p77 = scmp.ne.s32.totalorder %s62, %s76
      %p78 = scmp.eq.s32.totalorder %s31, 0
      %p79 = por %p77, %p78
      %s81 = sadd.s32 %s80, 1
      %p84 = scmp.eq.s32.totalorder %s25, 1
      %p85 = scmp.ne.s32.totalorder %s80, %s82
      %p86 = scmp.eq.s32.totalorder %s25, 0
      %p87 = por %p85, %p86
      %p88 = scmp.ne.s32.totalorder %s80, %s82
      %p89 = scmp.eq.s32.totalorder %s30, 1
      %p90 = por %p88, %p89
      %p91 = scmp.ne.s32.totalorder %s82, %s83
      %p92 = scmp.eq.s32.totalorder %s30, 0
      %p93 = por %p91, %p92
      %p94 = scmp.ne.s32.totalorder %s82, %s83
      %p95 = scmp.eq.s32.totalorder %s31, 1
      %p96 = por %p94, %p95
      %p98 = scmp.ne.s32.totalorder %s83, %s97
      %p99 = scmp.eq.s32.totalorder %s31, 0
      %p100 = por %p98, %p99
      %s102 = sadd.s32 %s101, 1
      %p105 = scmp.eq.s32.totalorder %s25, 1
      %p106 = scmp.ne.s32.totalorder %s101, %s103
      %p107 = scmp.eq.s32.totalorder %s25, 0
      %p108 = por %p106, %p107
      %p109 = scmp.ne.s32.totalorder %s101, %s103
      %p110 = scmp.eq.s32.totalorder %s30, 1
      %p111 = por %p109, %p110
      %p112 = scmp.ne.s32.totalorder %s103, %s104
      %p113 = scmp.eq.s32.totalorder %s30, 0
      %p114 = por %p112, %p113
      %p115 = scmp.ne.s32.totalorder %s103, %s104
      %p116 = scmp.eq.s32.totalorder %s31, 1
      %p117 = por %p115, %p116
      %p119 = scmp.ne.s32.totalorder %s104, %s118
      %p120 = scmp.eq.s32.totalorder %s31, 0
      %p121 = por %p119, %p120
      %s123 = sadd.s32 %s122, 1
      %p126 = scmp.eq.s32.totalorder %s25, 1
      %p127 = scmp.ne.s32.totalorder %s122, %s124
      %p128 = scmp.eq.s32.totalorder %s25, 0
      %p129 = por %p127, %p128
      %p130 = scmp.ne.s32.totalorder %s122, %s124
      %p131 = scmp.eq.s32.totalorder %s30, 1
      %p132 = por %p130, %p131
      %p133 = scmp.ne.s32.totalorder %s124, %s125
      %p134 = scmp.eq.s32.totalorder %s30, 0
      %p135 = por %p133, %p134
      %p136 = scmp.ne.s32.totalorder %s124, %s125
      %p137 = scmp.eq.s32.totalorder %s31, 1
      %p138 = por %p136, %p137
      %p140 = scmp.ne.s32.totalorder %s125, %s139
      %p141 = scmp.eq.s32.totalorder %s31, 0
      %p142 = por %p140, %p141
      %s144 = sadd.s32 %s143, 1
      %p147 = scmp.eq.s32.totalorder %s25, 1
      %p148 = scmp.ne.s32.totalorder %s143, %s145
      %p149 = scmp.eq.s32.totalorder %s25, 0
      %p150 = por %p148, %p149
      %p151 = scmp.ne.s32.totalorder %s143, %s145
      %p152 = scmp.eq.s32.totalorder %s30, 1
      %p153 = por %p151, %p152
      %p154 = scmp.ne.s32.totalorder %s145, %s146
      %p155 = scmp.eq.s32.totalorder %s30, 0
      %p156 = por %p154, %p155
      %p157 = scmp.ne.s32.totalorder %s145, %s146
      %p158 = scmp.eq.s32.totalorder %s31, 1
      %p159 = por %p157, %p158
      %p161 = scmp.ne.s32.totalorder %s146, %s160
      %p162 = scmp.eq.s32.totalorder %s31, 0
      %p163 = por %p161, %p162
      %s165 = sadd.s32 %s164, 1
      %p168 = scmp.eq.s32.totalorder %s25, 1
      %p169 = scmp.ne.s32.totalorder %s164, %s166
      %p170 = scmp.eq.s32.totalorder %s25, 0
      %p171 = por %p169, %p170
      %p172 = scmp.ne.s32.totalorder %s164, %s166
      %p173 = scmp.eq.s32.totalorder %s30, 1
      %p174 = por %p172, %p173
      %p175 = scmp.ne.s32.totalorder %s166, %s167
      %p176 = scmp.eq.s32.totalorder %s30, 0
      %p177 = por %p175, %p176
      %p178 = scmp.ne.s32.totalorder %s166, %s167
      %p179 = scmp.eq.s32.totalorder %s31, 1
      %p180 = por %p178, %p179
      %p182 = scmp.ne.s32.totalorder %s167, %s181
      %p183 = scmp.eq.s32.totalorder %s31, 0
      %p184 = por %p182, %p183
      %s186 = sadd.s32 %s185, 1
      %p189 = scmp.eq.s32.totalorder %s25, 1
      %p190 = scmp.ne.s32.totalorder %s185, %s187
      %p191 = scmp.eq.s32.totalorder %s25, 0
      %p192 = por %p190, %p191
      %p193 = scmp.ne.s32.totalorder %s185, %s187
      %p194 = scmp.eq.s32.totalorder %s30, 1
      %p195 = por %p193, %p194
      %p196 = scmp.ne.s32.totalorder %s187, %s188
      %p197 = scmp.eq.s32.totalorder %s30, 0
      %p198 = por %p196, %p197
      %p199 = scmp.ne.s32.totalorder %s187, %s188
      %p200 = scmp.eq.s32.totalorder %s31, 1
      %p201 = por %p199, %p200
      %p203 = scmp.ne.s32.totalorder %s188, %s202
      %p204 = scmp.eq.s32.totalorder %s31, 0
      %p205 = por %p203, %p204
      %s207 = sadd.s32 %s206, 1
      %p210 = scmp.eq.s32.totalorder %s25, 1
      %p211 = scmp.ne.s32.totalorder %s206, %s208
      %p212 = scmp.eq.s32.totalorder %s25, 0
      %p213 = por %p211, %p212
      %p214 = scmp.ne.s32.totalorder %s206, %s208
      %p215 = scmp.eq.s32.totalorder %s30, 1
      %p216 = por %p214, %p215
      %p217 = scmp.ne.s32.totalorder %s208, %s209
      %p218 = scmp.eq.s32.totalorder %s30, 0
      %p219 = por %p217, %p218
      %p220 = scmp.ne.s32.totalorder %s208, %s209
      %p221 = scmp.eq.s32.totalorder %s31, 1
      %p222 = por %p220, %p221
      %p224 = scmp.ne.s32.totalorder %s209, %s223
      %p225 = scmp.eq.s32.totalorder %s31, 0
      %p226 = por %p224, %p225
      %s228 = sadd.s32 %s227, 1
      %p231 = scmp.eq.s32.totalorder %s25, 1
      %p232 = scmp.ne.s32.totalorder %s227, %s229
      %p233 = scmp.eq.s32.totalorder %s25, 0
      %p234 = por %p232, %p233
      %p235 = scmp.ne.s32.totalorder %s227, %s229
      %p236 = scmp.eq.s32.totalorder %s30, 1
      %p237 = por %p235, %p236
      %p238 = scmp.ne.s32.totalorder %s229, %s230
      %p239 = scmp.eq.s32.totalorder %s30, 0
      %p240 = por %p238, %p239
      %p241 = scmp.ne.s32.totalorder %s229, %s230
      %p242 = scmp.eq.s32.totalorder %s31, 1
      %p243 = por %p241, %p242
      %p245 = scmp.ne.s32.totalorder %s230, %s244
      %p246 = scmp.eq.s32.totalorder %s31, 0
      %p247 = por %p245, %p246
      %s249 = sadd.s32 %s248, 1
      %p252 = scmp.eq.s32.totalorder %s25, 1
      %p253 = scmp.ne.s32.totalorder %s248, %s250
      %p254 = scmp.eq.s32.totalorder %s25, 0
      %p255 = por %p253, %p254
      %p256 = scmp.ne.s32.totalorder %s248, %s250
      %p257 = scmp.eq.s32.totalorder %s30, 1
      %p258 = por %p256, %p257
      %p259 = scmp.ne.s32.totalorder %s250, %s251
      %p260 = scmp.eq.s32.totalorder %s30, 0
      %p261 = por %p259, %p260
      %p262 = scmp.ne.s32.totalorder %s250, %s251
      %p263 = scmp.eq.s32.totalorder %s31, 1
      %p264 = por %p262, %p263
      %p266 = scmp.ne.s32.totalorder %s251, %s265
      %p267 = scmp.eq.s32.totalorder %s31, 0
      %p268 = por %p266, %p267
      %s270 = sadd.s32 %s269, 1
      %p273 = scmp.eq.s32.totalorder %s25, 1
      %p274 = scmp.ne.s32.totalorder %s269, %s271
      %p275 = scmp.eq.s32.totalorder %s25, 0
      %p276 = por %p274, %p275
      %p277 = scmp.ne.s32.totalorder %s269, %s271
      %p278 = scmp.eq.s32.totalorder %s30, 1
      %p279 = por %p277, %p278
      %p280 = scmp.ne.s32.totalorder %s271, %s272
      %p281 = scmp.eq.s32.totalorder %s30, 0
      %p282 = por %p280, %p281
      %p283 = scmp.ne.s32.totalorder %s271, %s272
      %p284 = scmp.eq.s32.totalorder %s31, 1
      %p285 = por %p283, %p284
      %p287 = scmp.ne.s32.totalorder %s272, %s286
      %p288 = scmp.eq.s32.totalorder %s31, 0
      %p289 = por %p287, %p288
      %s291 = sadd.s32 %s290, 1
      %p294 = scmp.eq.s32.totalorder %s25, 1
      %p295 = scmp.ne.s32.totalorder %s290, %s292
      %p296 = scmp.eq.s32.totalorder %s25, 0
      %p297 = por %p295, %p296
      %p298 = scmp.ne.s32.totalorder %s290, %s292
      %p299 = scmp.eq.s32.totalorder %s30, 1
      %p300 = por %p298, %p299
      %p301 = scmp.ne.s32.totalorder %s292, %s293
      %p302 = scmp.eq.s32.totalorder %s30, 0
      %p303 = por %p301, %p302
      %p304 = scmp.ne.s32.totalorder %s292, %s293
      %p305 = scmp.eq.s32.totalorder %s31, 1
      %p306 = por %p304, %p305
      %p308 = scmp.ne.s32.totalorder %s293, %s307
      %p309 = scmp.eq.s32.totalorder %s31, 0
      %p310 = por %p308, %p309
      %s311 = ssub.s32 %s25, %s32
      %p312 = scmp.eq.s32.totalorder %s311, 0
      %s314 = sadd.s32 %s313, 1
      %s315 = scalar_select %p312, %s313, %s314
      %p318 = pneg %p312
      %p319 = scmp.eq.s32.totalorder %s25, 1
      %p320 = por %p318, %p319
      %p321 = scmp.ne.s32.totalorder %s313, %s316
      %p322 = scmp.eq.s32.totalorder %s25, 0
      %p323 = por %p321, %p322
      %p324 = scmp.ne.s32.totalorder %s313, %s316
      %p325 = scmp.eq.s32.totalorder %s30, 1
      %p326 = por %p324, %p325
      %p327 = scmp.ne.s32.totalorder %s316, %s317
      %p328 = scmp.eq.s32.totalorder %s30, 0
      %p329 = por %p327, %p328
      %p330 = scmp.ne.s32.totalorder %s316, %s317
      %p331 = scmp.eq.s32.totalorder %s31, 1
      %p332 = por %p330, %p331
      %p334 = scmp.ne.s32.totalorder %s317, %s333
      %p335 = scmp.eq.s32.totalorder %s31, 0
      %p336 = por %p334, %p335
      %p337 = scmp.le.s32.totalorder 1, %s25
      %p338 = scmp.lt.s32.totalorder %s25, 3
      %p339 = pnand %p337, %p338
      %p340 = pneg %p339
      // Predicated region
      $region9: #{tpu_custom_call.1} parent=5 // pred_check
        _
      $region10: #{tpu_custom_call.1} parent=5 // pred_check_branch
        %342 = sbr.rel (%p339) target = $region12
      $region11: #{tpu_custom_call.1} parent=5 // pred_region
        %s343 = ssub.s32 %s25, 1
        // Predicated region
        $region13: #{tpu_custom_call.1} parent=11 // pred_check
          %p344 = pneg %p72
        $region14: #{tpu_custom_call.1} parent=11 // pred_check_branch
          %346 = sbr.rel (%p344) target = $region16
        $region15: #{tpu_custom_call.1} parent=11 // pred_region
          _
        $region16: #{tpu_custom_call.1} parent=11 // pred_fallthru
          _
        // Predicated region
        $region17: #{tpu_custom_call.1} parent=11 // pred_check
          %p347 = pneg %p93
        $region18: #{tpu_custom_call.1} parent=11 // pred_check_branch
          %349 = sbr.rel (%p347) target = $region20
        $region19: #{tpu_custom_call.1} parent=11 // pred_region
          _
        $region20: #{tpu_custom_call.1} parent=11 // pred_fallthru
          _
        // Predicated region
        $region21: #{tpu_custom_call.1} parent=11 // pred_check
          %p350 = pneg %p114
        $region22: #{tpu_custom_call.1} parent=11 // pred_check_branch
          %352 = sbr.rel (%p350) target = $region24
        $region23: #{tpu_custom_call.1} parent=11 // pred_region
          _
        $region24: #{tpu_custom_call.1} parent=11 // pred_fallthru
          _
        // Predicated region
        $region25: #{tpu_custom_call.1} parent=11 // pred_check
          %p353 = pneg %p135
        $region26: #{tpu_custom_call.1} parent=11 // pred_check_branch
          %355 = sbr.rel (%p353) target = $region28
        $region27: #{tpu_custom_call.1} parent=11 // pred_region
          _
        $region28: #{tpu_custom_call.1} parent=11 // pred_fallthru
          _
        // Predicated region
        $region29: #{tpu_custom_call.1} parent=11 // pred_check
          %p356 = pneg %p156
        $region30: #{tpu_custom_call.1} parent=11 // pred_check_branch
          %358 = sbr.rel (%p356) target = $region32
        $region31: #{tpu_custom_call.1} parent=11 // pred_region
          _
        $region32: #{tpu_custom_call.1} parent=11 // pred_fallthru
          _
        // Predicated region
        $region33: #{tpu_custom_call.1} parent=11 // pred_check
          %p359 = pneg %p177
        $region34: #{tpu_custom_call.1} parent=11 // pred_check_branch
          %361 = sbr.rel (%p359) target = $region36
        $region35: #{tpu_custom_call.1} parent=11 // pred_region
          _
        $region36: #{tpu_custom_call.1} parent=11 // pred_fallthru
          _
        // Predicated region
        $region37: #{tpu_custom_call.1} parent=11 // pred_check
          %p362 = pneg %p198
        $region38: #{tpu_custom_call.1} parent=11 // pred_check_branch
          %364 = sbr.rel (%p362) target = $region40
        $region39: #{tpu_custom_call.1} parent=11 // pred_region
          _
        $region40: #{tpu_custom_call.1} parent=11 // pred_fallthru
          _
        // Predicated region
        $region41: #{tpu_custom_call.1} parent=11 // pred_check
          %p365 = pneg %p219
        $region42: #{tpu_custom_call.1} parent=11 // pred_check_branch
          %367 = sbr.rel (%p365) target = $region44
        $region43: #{tpu_custom_call.1} parent=11 // pred_region
          _
        $region44: #{tpu_custom_call.1} parent=11 // pred_fallthru
          _
        // Predicated region
        $region45: #{tpu_custom_call.1} parent=11 // pred_check
          %p368 = pneg %p240
        $region46: #{tpu_custom_call.1} parent=11 // pred_check_branch
          %370 = sbr.rel (%p368) target = $region48
        $region47: #{tpu_custom_call.1} parent=11 // pred_region
          _
        $region48: #{tpu_custom_call.1} parent=11 // pred_fallthru
          _
        // Predicated region
        $region49: #{tpu_custom_call.1} parent=11 // pred_check
          %p371 = pneg %p261
        $region50: #{tpu_custom_call.1} parent=11 // pred_check_branch
          %373 = sbr.rel (%p371) target = $region52
        $region51: #{tpu_custom_call.1} parent=11 // pred_region
          _
        $region52: #{tpu_custom_call.1} parent=11 // pred_fallthru
          _
        // Predicated region
        $region53: #{tpu_custom_call.1} parent=11 // pred_check
          %p374 = pneg %p282
        $region54: #{tpu_custom_call.1} parent=11 // pred_check_branch
          %376 = sbr.rel (%p374) target = $region56
        $region55: #{tpu_custom_call.1} parent=11 // pred_region
          _
        $region56: #{tpu_custom_call.1} parent=11 // pred_fallthru
          _
        // Predicated region
        $region57: #{tpu_custom_call.1} parent=11 // pred_check
          %p377 = pneg %p303
        $region58: #{tpu_custom_call.1} parent=11 // pred_check_branch
          %379 = sbr.rel (%p377) target = $region60
        $region59: #{tpu_custom_call.1} parent=11 // pred_region
          _
        $region60: #{tpu_custom_call.1} parent=11 // pred_fallthru
          _
      $region12: #{tpu_custom_call.1} parent=5 // pred_fallthru
        _
      %p380 = scmp.lt.s32.totalorder %s25, 2
      // Predicated region
      $region61: #{tpu_custom_call.1} parent=5 // pred_check
        %p381 = pneg %p380
      $region62: #{tpu_custom_call.1} parent=5 // pred_check_branch
        %383 = sbr.rel (%p381) target = $region64
      $region63: #{tpu_custom_call.1} parent=5 // pred_region
        // Predicated region
        $region65: #{tpu_custom_call.1} parent=63 // pred_check
          %p384 = pneg %p45
        $region66: #{tpu_custom_call.1} parent=63 // pred_check_branch
          %386 = sbr.rel (%p384) target = $region68
        $region67: #{tpu_custom_call.1} parent=63 // pred_region
          %s387 = sand.u32 %s35, 1
          %s388 = scalar_lea.sflag [#allocation3], %s387
          %s389 = sand.u32 %s35, 1
          %s390 = smul.addr %s389, 8
          %s391 = scalar_lea.vmem [#allocation2], %s390
          %393 = vsyncadd %s388, 0
          %s394 = smul.addr %s25, 8
          %s395 = scalar_lea.hbm %s0, %s394
          %s397 = sshll.u32 %s395, 4
          %s398 = int_to_ptr.hbm [resolvable:$true] %s397
          %s399 = sshll.u32 %s391, 4
          %s400 = int_to_ptr.vmem [resolvable:$true] %s399
          %402 = dma.hbm_to_vmem [thread:$0]  %s398, 128, %s400, %s388
        $region68: #{tpu_custom_call.1} parent=63 // pred_fallthru
          _
      $region64: #{tpu_custom_call.1} parent=5 // pred_fallthru
        _
      %p403 = scmp.le.s32.totalorder 1, %s25
      %p404 = scmp.lt.s32.totalorder %s25, 3
      %p405 = pnand %p403, %p404
      %p406 = pneg %p405
      // Predicated region
      $region69: #{tpu_custom_call.1} parent=5 // pred_check
        _
      $region70: #{tpu_custom_call.1} parent=5 // pred_check_branch
        %408 = sbr.rel (%p405) target = $region72
      $region71: #{tpu_custom_call.1} parent=5 // pred_region
        %s409 = ssub.s32 %s25, 1
        %s410 = sand.u32 %s38, 1
        %s411 = scalar_lea.sflag [#allocation3], %s410
        %s412 = sand.u32 %s38, 1
        %s413 = smul.addr %s412, 8
        %s414 = scalar_lea.vmem [#allocation2], %s413
        // Predicated region
        $region73: #{tpu_custom_call.1} parent=71 // pred_check
          %p415 = pneg %p51
        $region74: #{tpu_custom_call.1} parent=71 // pred_check_branch
          %417 = sbr.rel (%p415) target = $region76
        $region75: #{tpu_custom_call.1} parent=71 // pred_region
          %419 = dma.done %s411, 128
        $region76: #{tpu_custom_call.1} parent=71 // pred_fallthru
          _
        %s420 = sand.u32 %s38, 1
        %s421 = scalar_lea.sflag [#allocation3], %s420
        %s422 = sand.u32 %s38, 1
        %s423 = smul.addr %s422, 8
        %s424 = scalar_lea.vmem [#allocation2], %s423
        %p425 = pneg %p51
        %p426 = pneg %p48
        %p427 = pneg %p72
        %p428 = pneg %p69
        %p429 = pneg %p93
        %p430 = pneg %p90
        %p431 = pneg %p114
        %p432 = pneg %p111
        %p433 = pneg %p135
        %p434 = pneg %p132
        %p435 = pneg %p156
        %p436 = pneg %p153
        %p437 = pneg %p177
        %p438 = pneg %p174
        %p439 = pneg %p198
        %p440 = pneg %p195
        %p441 = pneg %p219
        %p442 = pneg %p216
        %p443 = pneg %p240
        %p444 = pneg %p237
        %p445 = pneg %p261
        %p446 = pneg %p258
        %p447 = pneg %p282
        %p448 = pneg %p279
        %p449 = pneg %p303
        %p450 = pneg %p300
        %p451 = pneg %p329
        %p452 = pneg %p326
        %s453 = sand.u32 %s316, 1
        %s454 = scalar_lea.sflag [#allocation4], %s453
        %s455 = sand.u32 %s316, 1
        %s456 = smul.addr %s455, 8
        %s457 = scalar_lea.vmem [#allocation5], %s456
        %v458 = vld [vmem:[%s414] sm:$0xff]
        %v459 = vld [vmem:[%s1] sm:$0xff]
        %v460 = vld [vmem:[%s1 + $0x8] sm:$0xff]
        %v461 = vld [vmem:[%s1 + $0x10] sm:$0xff]
        %v462 = vld [vmem:[%s1 + $0x18] sm:$0xff]
        %v463 = vld [vmem:[%s2] sm:$0x1]
        %v465 = vperm.slane %v463, 0
        %vm467 = vcmask 261120
        %v469 = vsel %vm467, %v458, 0
        %471 = vmatpush.msra.mxu0 0.0
        %472 = vmatpush.msra.mxu0 0.0
        %473 = vmatpush.msra.mxu0 0.0
        %474 = vmatpush.msra.mxu0 0.0
        %475 = vmatpush.msra.mxu0 0.0
        %476 = vmatpush.msra.mxu0 0.0
        %477 = vmatpush.msra.mxu0 0.0
        %478 = vmatpush.msra.mxu0 0.0
        %479 = vmatpush.msra.mxu0 0.0
        %480 = vmatpush.msra.mxu0 0.0
        %481 = vmatpush.msra.mxu0 0.0
        %482 = vmatpush.msra.mxu0 0.0
        %483 = vmatpush.msra.mxu0 %v462
        %484 = vmatpush.msra.mxu0 %v461
        %485 = vmatpush.msra.mxu0 %v460
        %486 = vmatpush.msra.mxu0 %v459
        %487 = vmatmul.f32.gmra.mxu0 %v469
        %v488 = vpop.f32.mrf.mxu0
        %v489 = vadd.f32 %v465, %v488
        %490 = vdwg.mxu0
        %492 = vrot.lane.b32.xlu0 %v489, 96
        %v493 = vpop.permute.xlu0 %492
        %vm494 = vcmask 64512
        %v495 = vsel %vm494, %v489, 0
        %v497 = vsel %vm494, %v493, 0
        %499 = vmatpush.xpose.msra.mxu0 0.0
        %500 = vmatpush.xpose.msra.mxu0 0.0
        %501 = vmatpush.xpose.msra.mxu0 0.0
        %502 = vmatpush.xpose.msra.mxu0 0.0
        %503 = vmatpush.xpose.msra.mxu0 0.0
        %504 = vmatpush.xpose.msra.mxu0 0.0
        %505 = vmatpush.xpose.msra.mxu0 0.0
        %506 = vmatpush.xpose.msra.mxu0 0.0
        %507 = vmatpush.xpose.msra.mxu0 0.0
        %508 = vmatpush.xpose.msra.mxu0 0.0
        %509 = vmatpush.xpose.msra.mxu0 0.0
        %510 = vmatpush.xpose.msra.mxu0 0.0
        %511 = vmatpush.xpose.msra.mxu0 0.0
        %512 = vmatpush.xpose.msra.mxu0 0.0
        %513 = vmatpush.xpose.msra.mxu0 0.0
        %514 = vmatpush.xpose.msra.mxu0 %v497
        %515 = vmatmul.f32.gmra.mxu0 %v495
        %v516 = vpop.f32.mrf.mxu0
        %v517 = vadd.f32 0.0, %v516
        %518 = vdwg.mxu0
        %v519 = vsel %vm494, %v517, -inf
        %520 = vmax.xlane.f32.xlu0 %v519
        %v521 = vpop.xlane.xlu0 %520
        %v522 = vsub.f32 %v517, %v521
        %v523 = vmul.f32 %v522, 1.442695
        %v524 = vpow.pop %v523
        %v525 = vsel %vm494, %v524, 0.0
        %526 = vadd.xlane.f32.xlu0 %v525
        %v527 = vpop.xlane.xlu0 %526
        %528 = vrot.lane.b32.xlu0 %v489, 64
        %v529 = vpop.permute.xlu0 %528
        %v532 = vsel %vm494, %v524, 0
        %534 = vmatpush.msra.mxu0 0.0
        %535 = vmatpush.msra.mxu0 0.0
        %536 = vmatpush.msra.mxu0 0.0
        %537 = vmatpush.msra.mxu0 0.0
        %538 = vmatpush.msra.mxu0 0.0
        %539 = vmatpush.msra.mxu0 0.0
        %540 = vmatpush.msra.mxu0 0.0
        %541 = vmatpush.msra.mxu0 0.0
        %542 = vmatpush.msra.mxu0 0.0
        %543 = vmatpush.msra.mxu0 0.0
        %544 = vmatpush.msra.mxu0 0.0
        %545 = vmatpush.msra.mxu0 0.0
        %546 = vmatpush.msra.mxu0 0.0
        %547 = vmatpush.msra.mxu0 0.0
        %548 = vmatpush.msra.mxu0 0.0
        %549 = vmatpush.msra.mxu0 %v529
        %550 = vmatmul.f32.gmra.mxu0 %v532
        %v551 = vpop.f32.mrf.mxu0
        %v552 = vadd.f32 0.0, %v551
        %553 = vdwg.mxu0
        %v554 = vrcp.pop %v527
        %v555 = vmul.f32 %v527, %v554
        %v556 = vsub.f32 1.0, %v555
        %v557 = vmul.f32 %v554, %v556
        %v558 = vadd.f32 %v554, %v557
        %vm559 = vweird.f32 %v527
        %vm560 = vweird.f32 %v554
        %vm561 = vmor %vm559, %vm560
        %v562 = vsel %vm561, %v554, %v558
        %v563 = vand.u32 2147483647, %v527
        %vm564 = vcmp.eq.f32.partialorder %v563, 8.507059e+37
        %v565 = vand.u32 %v527, 2147483648
        %v566 = vor.u32 1.1754944e-38, %v565
        %v567 = vsel %vm564, %v566, %v562
        %v568 = vmul.f32 %v552, %v567
        %569 = vrot.lane.b32.xlu0 %v489, 120
        %v570 = vpop.permute.xlu0 %569
        %571 = vrot.lane.b32.xlu0 %v489, 88
        %v572 = vpop.permute.xlu0 %571
        %v573 = vsel %vm494, %v570, 0
        %v575 = vsel %vm494, %v572, 0
        %577 = vmatpush.xpose.msra.mxu0 0.0
        %578 = vmatpush.xpose.msra.mxu0 0.0
        %579 = vmatpush.xpose.msra.mxu0 0.0
        %580 = vmatpush.xpose.msra.mxu0 0.0
        %581 = vmatpush.xpose.msra.mxu0 0.0
        %582 = vmatpush.xpose.msra.mxu0 0.0
        %583 = vmatpush.xpose.msra.mxu0 0.0
        %584 = vmatpush.xpose.msra.mxu0 0.0
        %585 = vmatpush.xpose.msra.mxu0 0.0
        %586 = vmatpush.xpose.msra.mxu0 0.0
        %587 = vmatpush.xpose.msra.mxu0 0.0
        %588 = vmatpush.xpose.msra.mxu0 0.0
        %589 = vmatpush.xpose.msra.mxu0 0.0
        %590 = vmatpush.xpose.msra.mxu0 0.0
        %591 = vmatpush.xpose.msra.mxu0 0.0
        %592 = vmatpush.xpose.msra.mxu0 %v575
        %593 = vmatmul.f32.gmra.mxu0 %v573
        %v594 = vpop.f32.mrf.mxu0
        %v595 = vadd.f32 0.0, %v594
        %596 = vdwg.mxu0
        %v597 = vsel %vm494, %v595, -inf
        %598 = vmax.xlane.f32.xlu0 %v597
        %v599 = vpop.xlane.xlu0 %598
        %v600 = vsub.f32 %v595, %v599
        %v601 = vmul.f32 %v600, 1.442695
        %v602 = vpow.pop %v601
        %v603 = vsel %vm494, %v602, 0.0
        %604 = vadd.xlane.f32.xlu0 %v603
        %v605 = vpop.xlane.xlu0 %604
        %606 = vrot.lane.b32.xlu0 %v489, 56
        %v607 = vpop.permute.xlu0 %606
        %v610 = vsel %vm494, %v602, 0
        %612 = vmatpush.msra.mxu0 0.0
        %613 = vmatpush.msra.mxu0 0.0
        %614 = vmatpush.msra.mxu0 0.0
        %615 = vmatpush.msra.mxu0 0.0
        %616 = vmatpush.msra.mxu0 0.0
        %617 = vmatpush.msra.mxu0 0.0
        %618 = vmatpush.msra.mxu0 0.0
        %619 = vmatpush.msra.mxu0 0.0
        %620 = vmatpush.msra.mxu0 0.0
        %621 = vmatpush.msra.mxu0 0.0
        %622 = vmatpush.msra.mxu0 0.0
        %623 = vmatpush.msra.mxu0 0.0
        %624 = vmatpush.msra.mxu0 0.0
        %625 = vmatpush.msra.mxu0 0.0
        %626 = vmatpush.msra.mxu0 0.0
        %627 = vmatpush.msra.mxu0 %v607
        %628 = vmatmul.f32.gmra.mxu0 %v610
        %v629 = vpop.f32.mrf.mxu0
        %v630 = vadd.f32 0.0, %v629
        %631 = vdwg.mxu0
        %v632 = vrcp.pop %v605
        %v633 = vmul.f32 %v605, %v632
        %v634 = vsub.f32 1.0, %v633
        %v635 = vmul.f32 %v632, %v634
        %v636 = vadd.f32 %v632, %v635
        %vm637 = vweird.f32 %v605
        %vm638 = vweird.f32 %v632
        %vm639 = vmor %vm637, %vm638
        %v640 = vsel %vm639, %v632, %v636
        %v641 = vand.u32 2147483647, %v605
        %vm642 = vcmp.eq.f32.partialorder %v641, 8.507059e+37
        %v643 = vand.u32 %v605, 2147483648
        %v644 = vor.u32 1.1754944e-38, %v643
        %v645 = vsel %vm642, %v644, %v640
        %v646 = vmul.f32 %v630, %v645
        %647 = vrot.lane.b32.xlu0 %v489, 112
        %v648 = vpop.permute.xlu0 %647
        %649 = vrot.lane.b32.xlu0 %v489, 80
        %v650 = vpop.permute.xlu0 %649
        %v651 = vsel %vm494, %v648, 0
        %v653 = vsel %vm494, %v650, 0
        %655 = vmatpush.xpose.msra.mxu0 0.0
        %656 = vmatpush.xpose.msra.mxu0 0.0
        %657 = vmatpush.xpose.msra.mxu0 0.0
        %658 = vmatpush.xpose.msra.mxu0 0.0
        %659 = vmatpush.xpose.msra.mxu0 0.0
        %660 = vmatpush.xpose.msra.mxu0 0.0
        %661 = vmatpush.xpose.msra.mxu0 0.0
        %662 = vmatpush.xpose.msra.mxu0 0.0
        %663 = vmatpush.xpose.msra.mxu0 0.0
        %664 = vmatpush.xpose.msra.mxu0 0.0
        %665 = vmatpush.xpose.msra.mxu0 0.0
        %666 = vmatpush.xpose.msra.mxu0 0.0
        %667 = vmatpush.xpose.msra.mxu0 0.0
        %668 = vmatpush.xpose.msra.mxu0 0.0
        %669 = vmatpush.xpose.msra.mxu0 0.0
        %670 = vmatpush.xpose.msra.mxu0 %v653
        %671 = vmatmul.f32.gmra.mxu0 %v651
        %v672 = vpop.f32.mrf.mxu0
        %v673 = vadd.f32 0.0, %v672
        %674 = vdwg.mxu0
        %v675 = vsel %vm494, %v673, -inf
        %676 = vmax.xlane.f32.xlu0 %v675
        %v677 = vpop.xlane.xlu0 %676
        %v678 = vsub.f32 %v673, %v677
        %v679 = vmul.f32 %v678, 1.442695
        %v680 = vpow.pop %v679
        %v681 = vsel %vm494, %v680, 0.0
        %682 = vadd.xlane.f32.xlu0 %v681
        %v683 = vpop.xlane.xlu0 %682
        %684 = vrot.lane.b32.xlu0 %v489, 48
        %v685 = vpop.permute.xlu0 %684
        %v688 = vsel %vm494, %v680, 0
        %690 = vmatpush.msra.mxu0 0.0
        %691 = vmatpush.msra.mxu0 0.0
        %692 = vmatpush.msra.mxu0 0.0
        %693 = vmatpush.msra.mxu0 0.0
        %694 = vmatpush.msra.mxu0 0.0
        %695 = vmatpush.msra.mxu0 0.0
        %696 = vmatpush.msra.mxu0 0.0
        %697 = vmatpush.msra.mxu0 0.0
        %698 = vmatpush.msra.mxu0 0.0
        %699 = vmatpush.msra.mxu0 0.0
        %700 = vmatpush.msra.mxu0 0.0
        %701 = vmatpush.msra.mxu0 0.0
        %702 = vmatpush.msra.mxu0 0.0
        %703 = vmatpush.msra.mxu0 0.0
        %704 = vmatpush.msra.mxu0 0.0
        %705 = vmatpush.msra.mxu0 %v685
        %706 = vmatmul.f32.gmra.mxu0 %v688
        %v707 = vpop.f32.mrf.mxu0
        %v708 = vadd.f32 0.0, %v707
        %709 = vdwg.mxu0
        %v710 = vrcp.pop %v683
        %v711 = vmul.f32 %v683, %v710
        %v712 = vsub.f32 1.0, %v711
        %v713 = vmul.f32 %v710, %v712
        %v714 = vadd.f32 %v710, %v713
        %vm715 = vweird.f32 %v683
        %vm716 = vweird.f32 %v710
        %vm717 = vmor %vm715, %vm716
        %v718 = vsel %vm717, %v710, %v714
        %v719 = vand.u32 2147483647, %v683
        %vm720 = vcmp.eq.f32.partialorder %v719, 8.507059e+37
        %v721 = vand.u32 %v683, 2147483648
        %v722 = vor.u32 1.1754944e-38, %v721
        %v723 = vsel %vm720, %v722, %v718
        %v724 = vmul.f32 %v708, %v723
        %725 = vrot.lane.b32.xlu0 %v489, 104
        %v726 = vpop.permute.xlu0 %725
        %727 = vrot.lane.b32.xlu0 %v489, 72
        %v728 = vpop.permute.xlu0 %727
        %v729 = vsel %vm494, %v726, 0
        %v731 = vsel %vm494, %v728, 0
        %733 = vmatpush.xpose.msra.mxu0 0.0
        %734 = vmatpush.xpose.msra.mxu0 0.0
        %735 = vmatpush.xpose.msra.mxu0 0.0
        %736 = vmatpush.xpose.msra.mxu0 0.0
        %737 = vmatpush.xpose.msra.mxu0 0.0
        %738 = vmatpush.xpose.msra.mxu0 0.0
        %739 = vmatpush.xpose.msra.mxu0 0.0
        %740 = vmatpush.xpose.msra.mxu0 0.0
        %741 = vmatpush.xpose.msra.mxu0 0.0
        %742 = vmatpush.xpose.msra.mxu0 0.0
        %743 = vmatpush.xpose.msra.mxu0 0.0
        %744 = vmatpush.xpose.msra.mxu0 0.0
        %745 = vmatpush.xpose.msra.mxu0 0.0
        %746 = vmatpush.xpose.msra.mxu0 0.0
        %747 = vmatpush.xpose.msra.mxu0 0.0
        %748 = vmatpush.xpose.msra.mxu0 %v731
        %749 = vmatmul.f32.gmra.mxu0 %v729
        %v750 = vpop.f32.mrf.mxu0
        %v751 = vadd.f32 0.0, %v750
        %752 = vdwg.mxu0
        %v753 = vsel %vm494, %v751, -inf
        %754 = vmax.xlane.f32.xlu0 %v753
        %v755 = vpop.xlane.xlu0 %754
        %v756 = vsub.f32 %v751, %v755
        %v757 = vmul.f32 %v756, 1.442695
        %v758 = vpow.pop %v757
        %v759 = vsel %vm494, %v758, 0.0
        %760 = vadd.xlane.f32.xlu0 %v759
        %v761 = vpop.xlane.xlu0 %760
        %762 = vrot.lane.b32.xlu0 %v489, 40
        %v763 = vpop.permute.xlu0 %762
        %v766 = vsel %vm494, %v758, 0
        %768 = vmatpush.msra.mxu0 0.0
        %769 = vmatpush.msra.mxu0 0.0
        %770 = vmatpush.msra.mxu0 0.0
        %771 = vmatpush.msra.mxu0 0.0
        %772 = vmatpush.msra.mxu0 0.0
        %773 = vmatpush.msra.mxu0 0.0
        %774 = vmatpush.msra.mxu0 0.0
        %775 = vmatpush.msra.mxu0 0.0
        %776 = vmatpush.msra.mxu0 0.0
        %777 = vmatpush.msra.mxu0 0.0
        %778 = vmatpush.msra.mxu0 0.0
        %779 = vmatpush.msra.mxu0 0.0
        %780 = vmatpush.msra.mxu0 0.0
        %781 = vmatpush.msra.mxu0 0.0
        %782 = vmatpush.msra.mxu0 0.0
        %783 = vmatpush.msra.mxu0 %v763
        %784 = vmatmul.f32.gmra.mxu0 %v766
        %v785 = vpop.f32.mrf.mxu0
        %v786 = vadd.f32 0.0, %v785
        %787 = vdwg.mxu0
        %v788 = vrcp.pop %v761
        %v789 = vmul.f32 %v761, %v788
        %v790 = vsub.f32 1.0, %v789
        %v791 = vmul.f32 %v788, %v790
        %v792 = vadd.f32 %v788, %v791
        %vm793 = vweird.f32 %v761
        %vm794 = vweird.f32 %v788
        %vm795 = vmor %vm793, %vm794
        %v796 = vsel %vm795, %v788, %v792
        %v797 = vand.u32 2147483647, %v761
        %vm798 = vcmp.eq.f32.partialorder %v797, 8.507059e+37
        %v799 = vand.u32 %v761, 2147483648
        %v800 = vor.u32 1.1754944e-38, %v799
        %v801 = vsel %vm798, %v800, %v796
        %v802 = vmul.f32 %v786, %v801
        %804 = vrot.lane.b32.xlu0 %v646, 8
        %v805 = vpop.permute.xlu0 %804
        %808 = vrot.lane.b32.xlu0 %v724, 16
        %v809 = vpop.permute.xlu0 %808
        %812 = vrot.lane.b32.xlu0 %v802, 24
        %v813 = vpop.permute.xlu0 %812
        %v815 = vsel %vm494, %v568, %v805
        %vm816 = vcmask 130048
        %v817 = vsel %vm816, %v815, %v809
        %vm818 = vcmask 195584
        %v819 = vsel %vm818, %v817, %v813
        %v820 = vld [vmem:[%s3] sm:$0xff]
        %v821 = vld [vmem:[%s3 + $0x8] sm:$0xff]
        %v822 = vld [vmem:[%s3 + $0x10] sm:$0xff]
        %v823 = vld [vmem:[%s3 + $0x18] sm:$0xff]
        %v824 = vld [vmem:[%s4] sm:$0x1]
        %v826 = vperm.slane %v824, 0
        %v829 = vsel %vm467, %v819, 0
        %831 = vmatpush.msra.mxu0 0.0
        %832 = vmatpush.msra.mxu0 0.0
        %833 = vmatpush.msra.mxu0 0.0
        %834 = vmatpush.msra.mxu0 0.0
        %835 = vmatpush.msra.mxu0 0.0
        %836 = vmatpush.msra.mxu0 0.0
        %837 = vmatpush.msra.mxu0 0.0
        %838 = vmatpush.msra.mxu0 0.0
        %839 = vmatpush.msra.mxu0 0.0
        %840 = vmatpush.msra.mxu0 0.0
        %841 = vmatpush.msra.mxu0 0.0
        %842 = vmatpush.msra.mxu0 0.0
        %843 = vmatpush.msra.mxu0 %v823
        %844 = vmatpush.msra.mxu0 %v822
        %845 = vmatpush.msra.mxu0 %v821
        %846 = vmatpush.msra.mxu0 %v820
        %847 = vmatmul.f32.gmra.mxu0 %v829
        %v848 = vpop.f32.mrf.mxu0
        %v849 = vadd.f32 %v826, %v848
        %850 = vdwg.mxu0
        %v851 = vadd.f32 %v458, %v849
        %v852 = vld [vmem:[%s9] sm:$0x1]
        %v853 = vld [vmem:[%s10] sm:$0x1]
        %v854 = vsel %vm467, %v851, 0.0
        %855 = vadd.xlane.f32.xlu0 %v854
        %v856 = vpop.xlane.xlu0 %855
        %v857 = vrcp.pop 32.0
        %v858 = vmul.f32 32.0, %v857
        %v859 = vsub.f32 1.0, %v858
        %v860 = vmul.f32 %v857, %v859
        %v861 = vadd.f32 %v857, %v860
        %vm862 = vweird.f32 %v857
        %v863 = vsel %vm862, %v857, %v861
        %v864 = vmul.f32 %v856, %v863
        %v865 = vsub.f32 %v851, %v864
        %v866 = vmul.f32 %v865, %v865
        %v867 = vsel %vm467, %v866, 0.0
        %868 = vadd.xlane.f32.xlu0 %v867
        %v869 = vpop.xlane.xlu0 %868
        %v870 = vmul.f32 %v869, %v863
        %v871 = vadd.f32 %v870, 1e-05
        %v872 = vrsqrt.pop %v871
        %v873 = vmul.f32 %v872, %v871
        %v874 = vmul.f32 %v873, %v872
        %v875 = vmul.f32 0.5, %v874
        %v876 = vsub.f32 1.5, %v875
        %v877 = vmul.f32 %v872, %v876
        %vm878 = vweird.f32 %v871
        %vm879 = vweird.f32 %v872
        %vm880 = vmor %vm878, %vm879
        %v881 = vsel %vm880, %v872, %v877
        %v882 = vmul.f32 %v865, %v881
        %v884 = vperm.slane %v852, 0
        %v886 = vmul.f32 %v882, %v884
        %v888 = vperm.slane %v853, 0
        %v890 = vadd.f32 %v886, %v888
        %v891 = vld [vmem:[%s5] sm:$0xff]
        %v892 = vld [vmem:[%s5 + $0x8] sm:$0xff]
        %v893 = vld [vmem:[%s5 + $0x10] sm:$0xff]
        %v894 = vld [vmem:[%s5 + $0x18] sm:$0xff]
        %v895 = vld [vmem:[%s6] sm:$0x1]
        %v897 = vperm.slane %v895, 0
        %v900 = vsel %vm467, %v890, 0
        %902 = vmatpush.msra.mxu0 0.0
        %903 = vmatpush.msra.mxu0 0.0
        %904 = vmatpush.msra.mxu0 0.0
        %905 = vmatpush.msra.mxu0 0.0
        %906 = vmatpush.msra.mxu0 0.0
        %907 = vmatpush.msra.mxu0 0.0
        %908 = vmatpush.msra.mxu0 0.0
        %909 = vmatpush.msra.mxu0 0.0
        %910 = vmatpush.msra.mxu0 0.0
        %911 = vmatpush.msra.mxu0 0.0
        %912 = vmatpush.msra.mxu0 0.0
        %913 = vmatpush.msra.mxu0 0.0
        %914 = vmatpush.msra.mxu0 %v894
        %915 = vmatpush.msra.mxu0 %v893
        %916 = vmatpush.msra.mxu0 %v892
        %917 = vmatpush.msra.mxu0 %v891
        %918 = vmatmul.f32.gmra.mxu0 %v900
        %v919 = vpop.f32.mrf.mxu0
        %v920 = vadd.f32 %v897, %v919
        %921 = vdwg.mxu0
        %v922 = vmax.f32 %v920, 0.0
        %v923 = vld [vmem:[%s7] sm:$0xff]
        %v924 = vld [vmem:[%s7 + $0x8] sm:$0xff]
        %v925 = vld [vmem:[%s7 + $0x10] sm:$0xff]
        %v926 = vld [vmem:[%s7 + $0x18] sm:$0xff]
        %v927 = vld [vmem:[%s7 + $0x20] sm:$0xff]
        %v928 = vld [vmem:[%s7 + $0x28] sm:$0xff]
        %v929 = vld [vmem:[%s7 + $0x30] sm:$0xff]
        %v930 = vld [vmem:[%s7 + $0x38] sm:$0xff]
        %v931 = vld [vmem:[%s8] sm:$0x1]
        %v933 = vperm.slane %v931, 0
        %vm935 = vcmask 523264
        %v937 = vsel %vm935, %v922, 0
        %939 = vmatpush.msra.mxu0 0.0
        %940 = vmatpush.msra.mxu0 0.0
        %941 = vmatpush.msra.mxu0 0.0
        %942 = vmatpush.msra.mxu0 0.0
        %943 = vmatpush.msra.mxu0 0.0
        %944 = vmatpush.msra.mxu0 0.0
        %945 = vmatpush.msra.mxu0 0.0
        %946 = vmatpush.msra.mxu0 0.0
        %947 = vmatpush.msra.mxu0 %v930
        %948 = vmatpush.msra.mxu0 %v929
        %949 = vmatpush.msra.mxu0 %v928
        %950 = vmatpush.msra.mxu0 %v927
        %951 = vmatpush.msra.mxu0 %v926
        %952 = vmatpush.msra.mxu0 %v925
        %953 = vmatpush.msra.mxu0 %v924
        %954 = vmatpush.msra.mxu0 %v923
        %955 = vmatmul.f32.gmra.mxu0 %v937
        %v956 = vpop.f32.mrf.mxu0
        %v957 = vadd.f32 %v933, %v956
        %958 = vdwg.mxu0
        %v959 = vadd.f32 %v890, %v957
        %v960 = vld [vmem:[%s11] sm:$0x1]
        %v961 = vld [vmem:[%s12] sm:$0x1]
        %v962 = vsel %vm467, %v959, 0.0
        %963 = vadd.xlane.f32.xlu0 %v962
        %v964 = vpop.xlane.xlu0 %963
        %v965 = vmul.f32 %v964, %v863
        %v966 = vsub.f32 %v959, %v965
        %v967 = vmul.f32 %v966, %v966
        %v968 = vsel %vm467, %v967, 0.0
        %969 = vadd.xlane.f32.xlu0 %v968
        %v970 = vpop.xlane.xlu0 %969
        %v971 = vmul.f32 %v970, %v863
        %v972 = vadd.f32 %v971, 1e-05
        %v973 = vrsqrt.pop %v972
        %v974 = vmul.f32 %v973, %v972
        %v975 = vmul.f32 %v974, %v973
        %v976 = vmul.f32 0.5, %v975
        %v977 = vsub.f32 1.5, %v976
        %v978 = vmul.f32 %v973, %v977
        %vm979 = vweird.f32 %v972
        %vm980 = vweird.f32 %v973
        %vm981 = vmor %vm979, %vm980
        %v982 = vsel %vm981, %v973, %v978
        %v983 = vmul.f32 %v966, %v982
        %v985 = vperm.slane %v960, 0
        %v987 = vmul.f32 %v983, %v985
        %v989 = vperm.slane %v961, 0
        %v991 = vadd.f32 %v987, %v989
        %992 = vst.msk [vmem:[%s457] sm:$0xff] %vm467, %v991
        %s993 = sand.u32 %s316, 1
        %s994 = scalar_lea.sflag [#allocation4], %s993
        %s995 = sand.u32 %s316, 1
        %s996 = smul.addr %s995, 8
        %s997 = scalar_lea.vmem [#allocation5], %s996
        // Predicated region
        $region77: #{tpu_custom_call.1} parent=71 // pred_check
          %p998 = pneg %p326
        $region78: #{tpu_custom_call.1} parent=71 // pred_check_branch
          %1000 = sbr.rel (%p998) target = $region80
        $region79: #{tpu_custom_call.1} parent=71 // pred_region
          %1002 = vsyncadd %s994, 0
          %s1003 = smul.addr %s30, 8
          %s1004 = scalar_lea.hbm %s13, %s1003
          %s1006 = sshll.u32 %s997, 4
          %s1007 = int_to_ptr.vmem [resolvable:$true] %s1006
          %s1008 = sshll.u32 %s1004, 4
          %s1009 = int_to_ptr.hbm [resolvable:$true] %s1008
          %1011 = dma.vmem_to_hbm [thread:$0]  %s1007, 128, %s1009, %s994
        $region80: #{tpu_custom_call.1} parent=71 // pred_fallthru
          _
      $region72: #{tpu_custom_call.1} parent=5 // pred_fallthru
        _
      %p1012 = scmp.le.s32.totalorder 2, %s25
      // Predicated region
      $region81: #{tpu_custom_call.1} parent=5 // pred_check
        %p1013 = pneg %p1012
      $region82: #{tpu_custom_call.1} parent=5 // pred_check_branch
        %1015 = sbr.rel (%p1013) target = $region84
      $region83: #{tpu_custom_call.1} parent=5 // pred_region
        %s1016 = ssub.s32 %s25, 2
        // Predicated region
        $region85: #{tpu_custom_call.1} parent=83 // pred_check
          %p1017 = pneg %p332
        $region86: #{tpu_custom_call.1} parent=83 // pred_check_branch
          %1019 = sbr.rel (%p1017) target = $region88
        $region87: #{tpu_custom_call.1} parent=83 // pred_region
          %s1020 = sand.u32 %s317, 1
          %s1021 = scalar_lea.sflag [#allocation4], %s1020
          %s1022 = sand.u32 %s317, 1
          %s1023 = smul.addr %s1022, 8
          %s1024 = scalar_lea.vmem [#allocation5], %s1023
          %1026 = dma.done %s1021, 128
        $region88: #{tpu_custom_call.1} parent=83 // pred_fallthru
          _
      $region84: #{tpu_custom_call.1} parent=5 // pred_fallthru
        _
    $region6: #{tpu_custom_call.1} parent=1 // loop_footer
      %s29 = sadd.s32 1, %s25
    $region7: #{tpu_custom_call.1} parent=1 // loop_footer_branch
      %24 = sbr.rel target = $region3
    $region8: #{tpu_custom_call.1} parent=1 // loop_exit
      _
    %1027 = vsyncpa [#allocation3], 1
    %s1028 = scalar_lea.sflag [#allocation3], 1
    %1029 = vsyncpa %s1028, 1
    %1030 = vsyncpa [#allocation4], 1
    %s1031 = scalar_lea.sflag [#allocation4], 1
    %1032 = vsyncpa %s1031, 1

// kernel: tpu_custom_call.1
$region0: #{tpu_custom_call.1}
  #allocation0 [shape = 'u32[]', space=smem, size = 0x4, offset = 0x4, fixed_abs, tag = 'smem constant byte address 0x4 - core index']
  #allocation1 [shape = 'u32[72,128]{1,0:T(1,128)}', space=vmem, size = 0x9000, scoped, tag = 'internal scratch']
  %s0 = inlined_call_operand.hbm [shape: f32[16,32], index: 0, kind: input, shape index: {}]
  %s1 = inlined_call_operand.vmem [shape: f32[32,96], index: 1, kind: input, shape index: {}]
  %s2 = inlined_call_operand.vmem [shape: f32[1,96], index: 2, kind: input, shape index: {}]
  %s3 = inlined_call_operand.vmem [shape: f32[32,32], index: 3, kind: input, shape index: {}]
  %s4 = inlined_call_operand.vmem [shape: f32[1,32], index: 4, kind: input, shape index: {}]
  %s5 = inlined_call_operand.vmem [shape: f32[32,64], index: 5, kind: input, shape index: {}]
  %s6 = inlined_call_operand.vmem [shape: f32[1,64], index: 6, kind: input, shape index: {}]
  %s7 = inlined_call_operand.vmem [shape: f32[64,32], index: 7, kind: input, shape index: {}]
  %s8 = inlined_call_operand.vmem [shape: f32[1,32], index: 8, kind: input, shape index: {}]
  %s9 = inlined_call_operand.vmem [shape: f32[1,32], index: 9, kind: input, shape index: {}]
  %s10 = inlined_call_operand.vmem [shape: f32[1,32], index: 10, kind: input, shape index: {}]
  %s11 = inlined_call_operand.vmem [shape: f32[1,32], index: 11, kind: input, shape index: {}]
  %s12 = inlined_call_operand.vmem [shape: f32[1,32], index: 12, kind: input, shape index: {}]
  %s13 = inlined_call_operand.hbm [shape: f32[16,32], index: 13, kind: output, shape index: {}]
  %s14 = sld [smem:[#allocation0]]
  $region89: #{tpu_custom_call.1} parent=0
    _
  %s16 = ssub.s32 1, %s14
  %s17 = scalar_select 0, %s16, %s14
  $region1: #{tpu_custom_call.1} parent=0
    #allocation2 [shape = 'u8[8192]{0}', space=vmem, size = 0x2000, scoped, tag = 'input window, operand 0']
    #allocation3 [shape = 's32[2]{0}', space=sflag, size = 0x8, scoped, tag = 'scoped memory for tpu_custom_call.1']
    #allocation4 [shape = 's32[2]{0}', space=sflag, size = 0x8, scoped, tag = 'scoped memory for tpu_custom_call.1']
    #allocation5 [shape = 'u8[8192]{0}', space=vmem, size = 0x2000, scoped, tag = 'output window, operand 0']
    %18 = vsyncpa [#allocation3], 0
    %s19 = scalar_lea.sflag [#allocation3], 1
    %20 = vsyncpa %s19, 0
    %21 = vsyncpa [#allocation4], 0
    %s22 = scalar_lea.sflag [#allocation4], 1
    %23 = vsyncpa %s22, 0
    loop: start=0, step=1, limit=4
    $region2: #{tpu_custom_call.1} parent=1 // loop_pre_header
      _
    $region3: #{tpu_custom_call.1} parent=1 // loop_header
      %s25 = sphi 0, %s29
      %p26 = scmp.ge.s32.totalorder %s25, 4
      %s35 = sphi 0, %s37
      %s38 = sphi 0, %s35
      %s39 = sphi 0, %s38
      %s55 = sphi 0, %s39
      %s59 = sphi 0, %s59
      %s61 = sphi 0, %s59
      %s62 = sphi 0, %s61
      %s76 = sphi 0, %s62
      %s80 = sphi 0, %s80
      %s82 = sphi 0, %s80
      %s83 = sphi 0, %s82
      %s97 = sphi 0, %s83
      %s101 = sphi 0, %s101
      %s103 = sphi 0, %s101
      %s104 = sphi 0, %s103
      %s118 = sphi 0, %s104
      %s122 = sphi 0, %s122
      %s124 = sphi 0, %s122
      %s125 = sphi 0, %s124
      %s139 = sphi 0, %s125
      %s143 = sphi 0, %s143
      %s145 = sphi 0, %s143
      %s146 = sphi 0, %s145
      %s160 = sphi 0, %s146
      %s164 = sphi 0, %s164
      %s166 = sphi 0, %s164
      %s167 = sphi 0, %s166
      %s181 = sphi 0, %s167
      %s185 = sphi 0, %s185
      %s187 = sphi 0, %s185
      %s188 = sphi 0, %s187
      %s202 = sphi 0, %s188
      %s206 = sphi 0, %s206
      %s208 = sphi 0, %s206
      %s209 = sphi 0, %s208
      %s223 = sphi 0, %s209
      %s227 = sphi 0, %s227
      %s229 = sphi 0, %s227
      %s230 = sphi 0, %s229
      %s244 = sphi 0, %s230
      %s248 = sphi 0, %s248
      %s250 = sphi 0, %s248
      %s251 = sphi 0, %s250
      %s265 = sphi 0, %s251
      %s269 = sphi 0, %s269
      %s271 = sphi 0, %s269
      %s272 = sphi 0, %s271
      %s286 = sphi 0, %s272
      %s290 = sphi 0, %s290
      %s292 = sphi 0, %s290
      %s293 = sphi 0, %s292
      %s307 = sphi 0, %s293
      %s313 = sphi 0, %s315
      %s316 = sphi 0, %s313
      %s317 = sphi 0, %s316
      %s333 = sphi 0, %s317
    $region4: #{tpu_custom_call.1} parent=1 // loop_header_branch
      %28 = sbr.rel (%p26) target = $region8
    $region5: #{tpu_custom_call.1} parent=1 // loop_body
      %s30 = ssub.s32 %s25, 1
      %s31 = ssub.s32 %s25, 2
      %s32 = sadd.s32 %s25, 1
      %s33 = ssub.s32 %s25, %s32
      %p34 = scmp.eq.s32.totalorder %s33, 0
      %s36 = sadd.s32 %s35, 1
      %s37 = scalar_select %p34, %s35, %s36
      %p40 = pneg %p34
      %p41 = scmp.eq.s32.totalorder %s25, 1
      %p42 = por %p40, %p41
      %p43 = scmp.ne.s32.totalorder %s35, %s38
      %p44 = scmp.eq.s32.totalorder %s25, 0
      %p45 = por %p43, %p44
      %p46 = scmp.ne.s32.totalorder %s35, %s38
      %p47 = scmp.eq.s32.totalorder %s30, 1
      %p48 = por %p46, %p47
      %p49 = scmp.ne.s32.totalorder %s38, %s39
      %p50 = scmp.eq.s32.totalorder %s30, 0
      %p51 = por %p49, %p50
      %p52 = scmp.ne.s32.totalorder %s38, %s39
      %p53 = scmp.eq.s32.totalorder %s31, 1
      %p54 = por %p52, %p53
      %p56 = scmp.ne.s32.totalorder %s39, %s55
      %p57 = scmp.eq.s32.totalorder %s31, 0
      %p58 = por %p56, %p57
      %s60 = sadd.s32 %s59, 1
      %p63 = scmp.eq.s32.totalorder %s25, 1
      %p64 = scmp.ne.s32.totalorder %s59, %s61
      %p65 = scmp.eq.s32.totalorder %s25, 0
      %p66 = por %p64, %p65
      %p67 = scmp.ne.s32.totalorder %s59, %s61
      %p68 = scmp.eq.s32.totalorder %s30, 1
      %p69 = por %p67, %p68
      %p70 = scmp.ne.s32.totalorder %s61, %s62
      %p71 = scmp.eq.s32.totalorder %s30, 0
      %p72 = por %p70, %p71
      %p73 = scmp.ne.s32.totalorder %s61, %s62
      %p74 = scmp.eq.s32.totalorder %s31, 1
      %p75 = por %p73, %p74
      %p77 = scmp.ne.s32.totalorder %s62, %s76
      %p78 = scmp.eq.s32.totalorder %s31, 0
      %p79 = por %p77, %p78
      %s81 = sadd.s32 %s80, 1
      %p84 = scmp.eq.s32.totalorder %s25, 1
      %p85 = scmp.ne.s32.totalorder %s80, %s82
      %p86 = scmp.eq.s32.totalorder %s25, 0
      %p87 = por %p85, %p86
      %p88 = scmp.ne.s32.totalorder %s80, %s82
      %p89 = scmp.eq.s32.totalorder %s30, 1
      %p90 = por %p88, %p89
      %p91 = scmp.ne.s32.totalorder %s82, %s83
      %p92 = scmp.eq.s32.totalorder %s30, 0
      %p93 = por %p91, %p92
      %p94 = scmp.ne.s32.totalorder %s82, %s83
      %p95 = scmp.eq.s32.totalorder %s31, 1
      %p96 = por %p94, %p95
      %p98 = scmp.ne.s32.totalorder %s83, %s97
      %p99 = scmp.eq.s32.totalorder %s31, 0
      %p100 = por %p98, %p99
      %s102 = sadd.s32 %s101, 1
      %p105 = scmp.eq.s32.totalorder %s25, 1
      %p106 = scmp.ne.s32.totalorder %s101, %s103
      %p107 = scmp.eq.s32.totalorder %s25, 0
      %p108 = por %p106, %p107
      %p109 = scmp.ne.s32.totalorder %s101, %s103
      %p110 = scmp.eq.s32.totalorder %s30, 1
      %p111 = por %p109, %p110
      %p112 = scmp.ne.s32.totalorder %s103, %s104
      %p113 = scmp.eq.s32.totalorder %s30, 0
      %p114 = por %p112, %p113
      %p115 = scmp.ne.s32.totalorder %s103, %s104
      %p116 = scmp.eq.s32.totalorder %s31, 1
      %p117 = por %p115, %p116
      %p119 = scmp.ne.s32.totalorder %s104, %s118
      %p120 = scmp.eq.s32.totalorder %s31, 0
      %p121 = por %p119, %p120
      %s123 = sadd.s32 %s122, 1
      %p126 = scmp.eq.s32.totalorder %s25, 1
      %p127 = scmp.ne.s32.totalorder %s122, %s124
      %p128 = scmp.eq.s32.totalorder %s25, 0
      %p129 = por %p127, %p128
      %p130 = scmp.ne.s32.totalorder %s122, %s124
      %p131 = scmp.eq.s32.totalorder %s30, 1
      %p132 = por %p130, %p131
      %p133 = scmp.ne.s32.totalorder %s124, %s125
      %p134 = scmp.eq.s32.totalorder %s30, 0
      %p135 = por %p133, %p134
      %p136 = scmp.ne.s32.totalorder %s124, %s125
      %p137 = scmp.eq.s32.totalorder %s31, 1
      %p138 = por %p136, %p137
      %p140 = scmp.ne.s32.totalorder %s125, %s139
      %p141 = scmp.eq.s32.totalorder %s31, 0
      %p142 = por %p140, %p141
      %s144 = sadd.s32 %s143, 1
      %p147 = scmp.eq.s32.totalorder %s25, 1
      %p148 = scmp.ne.s32.totalorder %s143, %s145
      %p149 = scmp.eq.s32.totalorder %s25, 0
      %p150 = por %p148, %p149
      %p151 = scmp.ne.s32.totalorder %s143, %s145
      %p152 = scmp.eq.s32.totalorder %s30, 1
      %p153 = por %p151, %p152
      %p154 = scmp.ne.s32.totalorder %s145, %s146
      %p155 = scmp.eq.s32.totalorder %s30, 0
      %p156 = por %p154, %p155
      %p157 = scmp.ne.s32.totalorder %s145, %s146
      %p158 = scmp.eq.s32.totalorder %s31, 1
      %p159 = por %p157, %p158
      %p161 = scmp.ne.s32.totalorder %s146, %s160
      %p162 = scmp.eq.s32.totalorder %s31, 0
      %p163 = por %p161, %p162
      %s165 = sadd.s32 %s164, 1
      %p168 = scmp.eq.s32.totalorder %s25, 1
      %p169 = scmp.ne.s32.totalorder %s164, %s166
      %p170 = scmp.eq.s32.totalorder %s25, 0
      %p171 = por %p169, %p170
      %p172 = scmp.ne.s32.totalorder %s164, %s166
      %p173 = scmp.eq.s32.totalorder %s30, 1
      %p174 = por %p172, %p173
      %p175 = scmp.ne.s32.totalorder %s166, %s167
      %p176 = scmp.eq.s32.totalorder %s30, 0
      %p177 = por %p175, %p176
      %p178 = scmp.ne.s32.totalorder %s166, %s167
      %p179 = scmp.eq.s32.totalorder %s31, 1
      %p180 = por %p178, %p179
      %p182 = scmp.ne.s32.totalorder %s167, %s181
      %p183 = scmp.eq.s32.totalorder %s31, 0
      %p184 = por %p182, %p183
      %s186 = sadd.s32 %s185, 1
      %p189 = scmp.eq.s32.totalorder %s25, 1
      %p190 = scmp.ne.s32.totalorder %s185, %s187
      %p191 = scmp.eq.s32.totalorder %s25, 0
      %p192 = por %p190, %p191
      %p193 = scmp.ne.s32.totalorder %s185, %s187
      %p194 = scmp.eq.s32.totalorder %s30, 1
      %p195 = por %p193, %p194
      %p196 = scmp.ne.s32.totalorder %s187, %s188
      %p197 = scmp.eq.s32.totalorder %s30, 0
      %p198 = por %p196, %p197
      %p199 = scmp.ne.s32.totalorder %s187, %s188
      %p200 = scmp.eq.s32.totalorder %s31, 1
      %p201 = por %p199, %p200
      %p203 = scmp.ne.s32.totalorder %s188, %s202
      %p204 = scmp.eq.s32.totalorder %s31, 0
      %p205 = por %p203, %p204
      %s207 = sadd.s32 %s206, 1
      %p210 = scmp.eq.s32.totalorder %s25, 1
      %p211 = scmp.ne.s32.totalorder %s206, %s208
      %p212 = scmp.eq.s32.totalorder %s25, 0
      %p213 = por %p211, %p212
      %p214 = scmp.ne.s32.totalorder %s206, %s208
      %p215 = scmp.eq.s32.totalorder %s30, 1
      %p216 = por %p214, %p215
      %p217 = scmp.ne.s32.totalorder %s208, %s209
      %p218 = scmp.eq.s32.totalorder %s30, 0
      %p219 = por %p217, %p218
      %p220 = scmp.ne.s32.totalorder %s208, %s209
      %p221 = scmp.eq.s32.totalorder %s31, 1
      %p222 = por %p220, %p221
      %p224 = scmp.ne.s32.totalorder %s209, %s223
      %p225 = scmp.eq.s32.totalorder %s31, 0
      %p226 = por %p224, %p225
      %s228 = sadd.s32 %s227, 1
      %p231 = scmp.eq.s32.totalorder %s25, 1
      %p232 = scmp.ne.s32.totalorder %s227, %s229
      %p233 = scmp.eq.s32.totalorder %s25, 0
      %p234 = por %p232, %p233
      %p235 = scmp.ne.s32.totalorder %s227, %s229
      %p236 = scmp.eq.s32.totalorder %s30, 1
      %p237 = por %p235, %p236
      %p238 = scmp.ne.s32.totalorder %s229, %s230
      %p239 = scmp.eq.s32.totalorder %s30, 0
      %p240 = por %p238, %p239
      %p241 = scmp.ne.s32.totalorder %s229, %s230
      %p242 = scmp.eq.s32.totalorder %s31, 1
      %p243 = por %p241, %p242
      %p245 = scmp.ne.s32.totalorder %s230, %s244
      %p246 = scmp.eq.s32.totalorder %s31, 0
      %p247 = por %p245, %p246
      %s249 = sadd.s32 %s248, 1
      %p252 = scmp.eq.s32.totalorder %s25, 1
      %p253 = scmp.ne.s32.totalorder %s248, %s250
      %p254 = scmp.eq.s32.totalorder %s25, 0
      %p255 = por %p253, %p254
      %p256 = scmp.ne.s32.totalorder %s248, %s250
      %p257 = scmp.eq.s32.totalorder %s30, 1
      %p258 = por %p256, %p257
      %p259 = scmp.ne.s32.totalorder %s250, %s251
      %p260 = scmp.eq.s32.totalorder %s30, 0
      %p261 = por %p259, %p260
      %p262 = scmp.ne.s32.totalorder %s250, %s251
      %p263 = scmp.eq.s32.totalorder %s31, 1
      %p264 = por %p262, %p263
      %p266 = scmp.ne.s32.totalorder %s251, %s265
      %p267 = scmp.eq.s32.totalorder %s31, 0
      %p268 = por %p266, %p267
      %s270 = sadd.s32 %s269, 1
      %p273 = scmp.eq.s32.totalorder %s25, 1
      %p274 = scmp.ne.s32.totalorder %s269, %s271
      %p275 = scmp.eq.s32.totalorder %s25, 0
      %p276 = por %p274, %p275
      %p277 = scmp.ne.s32.totalorder %s269, %s271
      %p278 = scmp.eq.s32.totalorder %s30, 1
      %p279 = por %p277, %p278
      %p280 = scmp.ne.s32.totalorder %s271, %s272
      %p281 = scmp.eq.s32.totalorder %s30, 0
      %p282 = por %p280, %p281
      %p283 = scmp.ne.s32.totalorder %s271, %s272
      %p284 = scmp.eq.s32.totalorder %s31, 1
      %p285 = por %p283, %p284
      %p287 = scmp.ne.s32.totalorder %s272, %s286
      %p288 = scmp.eq.s32.totalorder %s31, 0
      %p289 = por %p287, %p288
      %s291 = sadd.s32 %s290, 1
      %p294 = scmp.eq.s32.totalorder %s25, 1
      %p295 = scmp.ne.s32.totalorder %s290, %s292
      %p296 = scmp.eq.s32.totalorder %s25, 0
      %p297 = por %p295, %p296
      %p298 = scmp.ne.s32.totalorder %s290, %s292
      %p299 = scmp.eq.s32.totalorder %s30, 1
      %p300 = por %p298, %p299
      %p301 = scmp.ne.s32.totalorder %s292, %s293
      %p302 = scmp.eq.s32.totalorder %s30, 0
      %p303 = por %p301, %p302
      %p304 = scmp.ne.s32.totalorder %s292, %s293
      %p305 = scmp.eq.s32.totalorder %s31, 1
      %p306 = por %p304, %p305
      %p308 = scmp.ne.s32.totalorder %s293, %s307
      %p309 = scmp.eq.s32.totalorder %s31, 0
      %p310 = por %p308, %p309
      %s311 = ssub.s32 %s25, %s32
      %p312 = scmp.eq.s32.totalorder %s311, 0
      %s314 = sadd.s32 %s313, 1
      %s315 = scalar_select %p312, %s313, %s314
      %p318 = pneg %p312
      %p319 = scmp.eq.s32.totalorder %s25, 1
      %p320 = por %p318, %p319
      %p321 = scmp.ne.s32.totalorder %s313, %s316
      %p322 = scmp.eq.s32.totalorder %s25, 0
      %p323 = por %p321, %p322
      %p324 = scmp.ne.s32.totalorder %s313, %s316
      %p325 = scmp.eq.s32.totalorder %s30, 1
      %p326 = por %p324, %p325
      %p327 = scmp.ne.s32.totalorder %s316, %s317
      %p328 = scmp.eq.s32.totalorder %s30, 0
      %p329 = por %p327, %p328
      %p330 = scmp.ne.s32.totalorder %s316, %s317
      %p331 = scmp.eq.s32.totalorder %s31, 1
      %p332 = por %p330, %p331
      %p334 = scmp.ne.s32.totalorder %s317, %s333
      %p335 = scmp.eq.s32.totalorder %s31, 0
      %p336 = por %p334, %p335
      %p337 = scmp.le.s32.totalorder 1, %s25
      %p338 = scmp.lt.s32.totalorder %s25, 3
      %p339 = pnand %p337, %p338
      %p340 = pneg %p339
      // Predicated region
      $region9: #{tpu_custom_call.1} parent=5 // pred_check
        _
      $region10: #{tpu_custom_call.1} parent=5 // pred_check_branch
        %342 = sbr.rel (%p339) target = $region12
      $region11: #{tpu_custom_call.1} parent=5 // pred_region
        %s343 = ssub.s32 %s25, 1
        // Predicated region
        $region13: #{tpu_custom_call.1} parent=11 // pred_check
          %p344 = pneg %p72
        $region14: #{tpu_custom_call.1} parent=11 // pred_check_branch
          %346 = sbr.rel (%p344) target = $region16
        $region15: #{tpu_custom_call.1} parent=11 // pred_region
          _
        $region16: #{tpu_custom_call.1} parent=11 // pred_fallthru
          _
        // Predicated region
        $region17: #{tpu_custom_call.1} parent=11 // pred_check
          %p347 = pneg %p93
        $region18: #{tpu_custom_call.1} parent=11 // pred_check_branch
          %349 = sbr.rel (%p347) target = $region20
        $region19: #{tpu_custom_call.1} parent=11 // pred_region
          _
        $region20: #{tpu_custom_call.1} parent=11 // pred_fallthru
          _
        // Predicated region
        $region21: #{tpu_custom_call.1} parent=11 // pred_check
          %p350 = pneg %p114
        $region22: #{tpu_custom_call.1} parent=11 // pred_check_branch
          %352 = sbr.rel (%p350) target = $region24
        $region23: #{tpu_custom_call.1} parent=11 // pred_region
          _
        $region24: #{tpu_custom_call.1} parent=11 // pred_fallthru
          _
        // Predicated region
        $region25: #{tpu_custom_call.1} parent=11 // pred_check
          %p353 = pneg %p135
        $region26: #{tpu_custom_call.1} parent=11 // pred_check_branch
          %355 = sbr.rel (%p353) target = $region28
        $region27: #{tpu_custom_call.1} parent=11 // pred_region
          _
        $region28: #{tpu_custom_call.1} parent=11 // pred_fallthru
          _
        // Predicated region
        $region29: #{tpu_custom_call.1} parent=11 // pred_check
          %p356 = pneg %p156
        $region30: #{tpu_custom_call.1} parent=11 // pred_check_branch
          %358 = sbr.rel (%p356) target = $region32
        $region31: #{tpu_custom_call.1} parent=11 // pred_region
          _
        $region32: #{tpu_custom_call.1} parent=11 // pred_fallthru
          _
        // Predicated region
        $region33: #{tpu_custom_call.1} parent=11 // pred_check
          %p359 = pneg %p177
        $region34: #{tpu_custom_call.1} parent=11 // pred_check_branch
          %361 = sbr.rel (%p359) target = $region36
        $region35: #{tpu_custom_call.1} parent=11 // pred_region
          _
        $region36: #{tpu_custom_call.1} parent=11 // pred_fallthru
          _
        // Predicated region
        $region37: #{tpu_custom_call.1} parent=11 // pred_check
          %p362 = pneg %p198
        $region38: #{tpu_custom_call.1} parent=11 // pred_check_branch
          %364 = sbr.rel (%p362) target = $region40
        $region39: #{tpu_custom_call.1} parent=11 // pred_region
          _
        $region40: #{tpu_custom_call.1} parent=11 // pred_fallthru
          _
        // Predicated region
        $region41: #{tpu_custom_call.1} parent=11 // pred_check
          %p365 = pneg %p219
        $region42: #{tpu_custom_call.1} parent=11 // pred_check_branch
          %367 = sbr.rel (%p365) target = $region44
        $region43: #{tpu_custom_call.1} parent=11 // pred_region
          _
        $region44: #{tpu_custom_call.1} parent=11 // pred_fallthru
          _
        // Predicated region
        $region45: #{tpu_custom_call.1} parent=11 // pred_check
          %p368 = pneg %p240
        $region46: #{tpu_custom_call.1} parent=11 // pred_check_branch
          %370 = sbr.rel (%p368) target = $region48
        $region47: #{tpu_custom_call.1} parent=11 // pred_region
          _
        $region48: #{tpu_custom_call.1} parent=11 // pred_fallthru
          _
        // Predicated region
        $region49: #{tpu_custom_call.1} parent=11 // pred_check
          %p371 = pneg %p261
        $region50: #{tpu_custom_call.1} parent=11 // pred_check_branch
          %373 = sbr.rel (%p371) target = $region52
        $region51: #{tpu_custom_call.1} parent=11 // pred_region
          _
        $region52: #{tpu_custom_call.1} parent=11 // pred_fallthru
          _
        // Predicated region
        $region53: #{tpu_custom_call.1} parent=11 // pred_check
          %p374 = pneg %p282
        $region54: #{tpu_custom_call.1} parent=11 // pred_check_branch
          %376 = sbr.rel (%p374) target = $region56
        $region55: #{tpu_custom_call.1} parent=11 // pred_region
          _
        $region56: #{tpu_custom_call.1} parent=11 // pred_fallthru
          _
        // Predicated region
        $region57: #{tpu_custom_call.1} parent=11 // pred_check
          %p377 = pneg %p303
        $region58: #{tpu_custom_call.1} parent=11 // pred_check_branch
          %379 = sbr.rel (%p377) target = $region60
        $region59: #{tpu_custom_call.1} parent=11 // pred_region
          _
        $region60: #{tpu_custom_call.1} parent=11 // pred_fallthru
          _
      $region12: #{tpu_custom_call.1} parent=5 // pred_fallthru
        _
      %p380 = scmp.lt.s32.totalorder %s25, 2
      // Predicated region
      $region61: #{tpu_custom_call.1} parent=5 // pred_check
        %p381 = pneg %p380
      $region62: #{tpu_custom_call.1} parent=5 // pred_check_branch
        %383 = sbr.rel (%p381) target = $region64
      $region63: #{tpu_custom_call.1} parent=5 // pred_region
        // Predicated region
        $region65: #{tpu_custom_call.1} parent=63 // pred_check
          %p384 = pneg %p45
        $region66: #{tpu_custom_call.1} parent=63 // pred_check_branch
          %386 = sbr.rel (%p384) target = $region68
        $region67: #{tpu_custom_call.1} parent=63 // pred_region
          %s387 = sand.u32 %s35, 1
          %s388 = scalar_lea.sflag [#allocation3], %s387
          %s389 = sand.u32 %s35, 1
          %s390 = smul.addr %s389, 8
          %s391 = scalar_lea.vmem [#allocation2], %s390
          %393 = vsyncadd %s388, 0
          %s394 = smul.addr %s25, 8
          %s395 = scalar_lea.hbm %s0, %s394
          %s397 = sshll.u32 %s395, 4
          %s398 = int_to_ptr.hbm [resolvable:$true] %s397
          %s399 = sshll.u32 %s391, 4
          %s400 = int_to_ptr.vmem [resolvable:$true] %s399
          %402 = dma.hbm_to_vmem [thread:$0]  %s398, 128, %s400, %s388
        $region68: #{tpu_custom_call.1} parent=63 // pred_fallthru
          _
      $region64: #{tpu_custom_call.1} parent=5 // pred_fallthru
        _
      %p403 = scmp.le.s32.totalorder 1, %s25
      %p404 = scmp.lt.s32.totalorder %s25, 3
      %p405 = pnand %p403, %p404
      %p406 = pneg %p405
      // Predicated region
      $region69: #{tpu_custom_call.1} parent=5 // pred_check
        _
      $region70: #{tpu_custom_call.1} parent=5 // pred_check_branch
        %408 = sbr.rel (%p405) target = $region72
      $region71: #{tpu_custom_call.1} parent=5 // pred_region
        %s409 = ssub.s32 %s25, 1
        %s410 = sand.u32 %s38, 1
        %s411 = scalar_lea.sflag [#allocation3], %s410
        %s412 = sand.u32 %s38, 1
        %s413 = smul.addr %s412, 8
        %s414 = scalar_lea.vmem [#allocation2], %s413
        // Predicated region
        $region73: #{tpu_custom_call.1} parent=71 // pred_check
          %p415 = pneg %p51
        $region74: #{tpu_custom_call.1} parent=71 // pred_check_branch
          %417 = sbr.rel (%p415) target = $region76
        $region75: #{tpu_custom_call.1} parent=71 // pred_region
          %419 = dma.done %s411, 128
        $region76: #{tpu_custom_call.1} parent=71 // pred_fallthru
          _
        %s420 = sand.u32 %s38, 1
        %s421 = scalar_lea.sflag [#allocation3], %s420
        %s422 = sand.u32 %s38, 1
        %s423 = smul.addr %s422, 8
        %s424 = scalar_lea.vmem [#allocation2], %s423
        %p425 = pneg %p51
        %p426 = pneg %p48
        %p427 = pneg %p72
        %p428 = pneg %p69
        %p429 = pneg %p93
        %p430 = pneg %p90
        %p431 = pneg %p114
        %p432 = pneg %p111
        %p433 = pneg %p135
        %p434 = pneg %p132
        %p435 = pneg %p156
        %p436 = pneg %p153
        %p437 = pneg %p177
        %p438 = pneg %p174
        %p439 = pneg %p198
        %p440 = pneg %p195
        %p441 = pneg %p219
        %p442 = pneg %p216
        %p443 = pneg %p240
        %p444 = pneg %p237
        %p445 = pneg %p261
        %p446 = pneg %p258
        %p447 = pneg %p282
        %p448 = pneg %p279
        %p449 = pneg %p303
        %p450 = pneg %p300
        %p451 = pneg %p329
        %p452 = pneg %p326
        %s453 = sand.u32 %s316, 1
        %s454 = scalar_lea.sflag [#allocation4], %s453
        %s455 = sand.u32 %s316, 1
        %s456 = smul.addr %s455, 8
        %s457 = scalar_lea.vmem [#allocation5], %s456
        %v458 = vld [vmem:[%s414] sm:$0xff]
        %v459 = vld [vmem:[%s1] sm:$0xff]
        %v460 = vld [vmem:[%s1 + $0x8] sm:$0xff]
        %v461 = vld [vmem:[%s1 + $0x10] sm:$0xff]
        %v462 = vld [vmem:[%s1 + $0x18] sm:$0xff]
        %v463 = vld [vmem:[%s2] sm:$0x1]
        %v465 = vperm.slane %v463, 0
        %vm467 = vcmask 261120
        %v469 = vsel %vm467, %v458, 0
        %471 = vmatpush.msra.mxu0 0.0
        %472 = vmatpush.msra.mxu0 0.0
        %473 = vmatpush.msra.mxu0 0.0
        %474 = vmatpush.msra.mxu0 0.0
        %475 = vmatpush.msra.mxu0 0.0
        %476 = vmatpush.msra.mxu0 0.0
        %477 = vmatpush.msra.mxu0 0.0
        %478 = vmatpush.msra.mxu0 0.0
        %479 = vmatpush.msra.mxu0 0.0
        %480 = vmatpush.msra.mxu0 0.0
        %481 = vmatpush.msra.mxu0 0.0
        %482 = vmatpush.msra.mxu0 0.0
        %483 = vmatpush.msra.mxu0 %v462
        %484 = vmatpush.msra.mxu0 %v461
        %485 = vmatpush.msra.mxu0 %v460
        %486 = vmatpush.msra.mxu0 %v459
        %487 = vmatmul.f32.gmra.mxu0 %v469
        %v488 = vpop.f32.mrf.mxu0
        %v489 = vadd.f32 %v465, %v488
        %490 = vdwg.mxu0
        %492 = vrot.lane.b32.xlu0 %v489, 96
        %v493 = vpop.permute.xlu0 %492
        %vm494 = vcmask 64512
        %v495 = vsel %vm494, %v489, 0
        %v497 = vsel %vm494, %v493, 0
        %499 = vmatpush.xpose.msra.mxu0 0.0
        %500 = vmatpush.xpose.msra.mxu0 0.0
        %501 = vmatpush.xpose.msra.mxu0 0.0
        %502 = vmatpush.xpose.msra.mxu0 0.0
        %503 = vmatpush.xpose.msra.mxu0 0.0
        %504 = vmatpush.xpose.msra.mxu0 0.0
        %505 = vmatpush.xpose.msra.mxu0 0.0
        %506 = vmatpush.xpose.msra.mxu0 0.0
        %507 = vmatpush.xpose.msra.mxu0 0.0
        %508 = vmatpush.xpose.msra.mxu0 0.0
        %509 = vmatpush.xpose.msra.mxu0 0.0
        %510 = vmatpush.xpose.msra.mxu0 0.0
        %511 = vmatpush.xpose.msra.mxu0 0.0
        %512 = vmatpush.xpose.msra.mxu0 0.0
        %513 = vmatpush.xpose.msra.mxu0 0.0
        %514 = vmatpush.xpose.msra.mxu0 %v497
        %515 = vmatmul.f32.gmra.mxu0 %v495
        %v516 = vpop.f32.mrf.mxu0
        %v517 = vadd.f32 0.0, %v516
        %518 = vdwg.mxu0
        %v519 = vsel %vm494, %v517, -inf
        %520 = vmax.xlane.f32.xlu0 %v519
        %v521 = vpop.xlane.xlu0 %520
        %v522 = vsub.f32 %v517, %v521
        %v523 = vmul.f32 %v522, 1.442695
        %v524 = vpow.pop %v523
        %v525 = vsel %vm494, %v524, 0.0
        %526 = vadd.xlane.f32.xlu0 %v525
        %v527 = vpop.xlane.xlu0 %526
        %528 = vrot.lane.b32.xlu0 %v489, 64
        %v529 = vpop.permute.xlu0 %528
        %v532 = vsel %vm494, %v524, 0
        %534 = vmatpush.msra.mxu0 0.0
        %535 = vmatpush.msra.mxu0 0.0
        %536 = vmatpush.msra.mxu0 0.0
        %537 = vmatpush.msra.mxu0 0.0
        %538 = vmatpush.msra.mxu0 0.0
        %539 = vmatpush.msra.mxu0 0.0
        %540 = vmatpush.msra.mxu0 0.0
        %541 = vmatpush.msra.mxu0 0.0
        %542 = vmatpush.msra.mxu0 0.0
        %543 = vmatpush.msra.mxu0 0.0
        %544 = vmatpush.msra.mxu0 0.0
        %545 = vmatpush.msra.mxu0 0.0
        %546 = vmatpush.msra.mxu0 0.0
        %547 = vmatpush.msra.mxu0 0.0
        %548 = vmatpush.msra.mxu0 0.0
        %549 = vmatpush.msra.mxu0 %v529
        %550 = vmatmul.f32.gmra.mxu0 %v532
        %v551 = vpop.f32.mrf.mxu0
        %v552 = vadd.f32 0.0, %v551
        %553 = vdwg.mxu0
        %v554 = vrcp.pop %v527
        %v555 = vmul.f32 %v527, %v554
        %v556 = vsub.f32 1.0, %v555
        %v557 = vmul.f32 %v554, %v556
        %v558 = vadd.f32 %v554, %v557
        %vm559 = vweird.f32 %v527
        %vm560 = vweird.f32 %v554
        %vm561 = vmor %vm559, %vm560
        %v562 = vsel %vm561, %v554, %v558
        %v563 = vand.u32 2147483647, %v527
        %vm564 = vcmp.eq.f32.partialorder %v563, 8.507059e+37
        %v565 = vand.u32 %v527, 2147483648
        %v566 = vor.u32 1.1754944e-38, %v565
        %v567 = vsel %vm564, %v566, %v562
        %v568 = vmul.f32 %v552, %v567
        %569 = vrot.lane.b32.xlu0 %v489, 120
        %v570 = vpop.permute.xlu0 %569
        %571 = vrot.lane.b32.xlu0 %v489, 88
        %v572 = vpop.permute.xlu0 %571
        %v573 = vsel %vm494, %v570, 0
        %v575 = vsel %vm494, %v572, 0
        %577 = vmatpush.xpose.msra.mxu0 0.0
        %578 = vmatpush.xpose.msra.mxu0 0.0
        %579 = vmatpush.xpose.msra.mxu0 0.0
        %580 = vmatpush.xpose.msra.mxu0 0.0
        %581 = vmatpush.xpose.msra.mxu0 0.0
        %582 = vmatpush.xpose.msra.mxu0 0.0
        %583 = vmatpush.xpose.msra.mxu0 0.0
        %584 = vmatpush.xpose.msra.mxu0 0.0
        %585 = vmatpush.xpose.msra.mxu0 0.0
        %586 = vmatpush.xpose.msra.mxu0 0.0
        %587 = vmatpush.xpose.msra.mxu0 0.0
        %588 = vmatpush.xpose.msra.mxu0 0.0
        %589 = vmatpush.xpose.msra.mxu0 0.0
        %590 = vmatpush.xpose.msra.mxu0 0.0
        %591 = vmatpush.xpose.msra.mxu0 0.0
        %592 = vmatpush.xpose.msra.mxu0 %v575
        %593 = vmatmul.f32.gmra.mxu0 %v573
        %v594 = vpop.f32.mrf.mxu0
        %v595 = vadd.f32 0.0, %v594
        %596 = vdwg.mxu0
        %v597 = vsel %vm494, %v595, -inf
        %598 = vmax.xlane.f32.xlu0 %v597
        %v599 = vpop.xlane.xlu0 %598
        %v600 = vsub.f32 %v595, %v599
        %v601 = vmul.f32 %v600, 1.442695
        %v602 = vpow.pop %v601
        %v603 = vsel %vm494, %v602, 0.0
        %604 = vadd.xlane.f32.xlu0 %v603
        %v605 = vpop.xlane.xlu0 %604
        %606 = vrot.lane.b32.xlu0 %v489, 56
        %v607 = vpop.permute.xlu0 %606
        %v610 = vsel %vm494, %v602, 0
        %612 = vmatpush.msra.mxu0 0.0
        %613 = vmatpush.msra.mxu0 0.0
        %614 = vmatpush.msra.mxu0 0.0
        %615 = vmatpush.msra.mxu0 0.0
        %616 = vmatpush.msra.mxu0 0.0
        %617 = vmatpush.msra.mxu0 0.0
        %618 = vmatpush.msra.mxu0 0.0
        %619 = vmatpush.msra.mxu0 0.0
        %620 = vmatpush.msra.mxu0 0.0
        %621 = vmatpush.msra.mxu0 0.0
        %622 = vmatpush.msra.mxu0 0.0
        %623 = vmatpush.msra.mxu0 0.0
        %624 = vmatpush.msra.mxu0 0.0
        %625 = vmatpush.msra.mxu0 0.0
        %626 = vmatpush.msra.mxu0 0.0
        %627 = vmatpush.msra.mxu0 %v607
        %628 = vmatmul.f32.gmra.mxu0 %v610
        %v629 = vpop.f32.mrf.mxu0
        %v630 = vadd.f32 0.0, %v629
        %631 = vdwg.mxu0
        %v632 = vrcp.pop %v605
        %v633 = vmul.f32 %v605, %v632
        %v634 = vsub.f32 1.0, %v633
        %v635 = vmul.f32 %v632, %v634
        %v636 = vadd.f32 %v632, %v635
        %vm637 = vweird.f32 %v605
        %vm638 = vweird.f32 %v632
        %vm639 = vmor %vm637, %vm638
        %v640 = vsel %vm639, %v632, %v636
        %v641 = vand.u32 2147483647, %v605
        %vm642 = vcmp.eq.f32.partialorder %v641, 8.507059e+37
        %v643 = vand.u32 %v605, 2147483648
        %v644 = vor.u32 1.1754944e-38, %v643
        %v645 = vsel %vm642, %v644, %v640
        %v646 = vmul.f32 %v630, %v645
        %647 = vrot.lane.b32.xlu0 %v489, 112
        %v648 = vpop.permute.xlu0 %647
        %649 = vrot.lane.b32.xlu0 %v489, 80
        %v650 = vpop.permute.xlu0 %649
        %v651 = vsel %vm494, %v648, 0
        %v653 = vsel %vm494, %v650, 0
        %655 = vmatpush.xpose.msra.mxu0 0.0
        %656 = vmatpush.xpose.msra.mxu0 0.0
        %657 = vmatpush.xpose.msra.mxu0 0.0
        %658 = vmatpush.xpose.msra.mxu0 0.0
        %659 = vmatpush.xpose.msra.mxu0 0.0
        %660 = vmatpush.xpose.msra.mxu0 0.0
        %661 = vmatpush.xpose.msra.mxu0 0.0
        %662 = vmatpush.xpose.msra.mxu0 0.0
        %663 = vmatpush.xpose.msra.mxu0 0.0
        %664 = vmatpush.xpose.msra.mxu0 0.0
        %665 = vmatpush.xpose.msra.mxu0 0.0
        %666 = vmatpush.xpose.msra.mxu0 0.0
        %667 = vmatpush.xpose.msra.mxu0 0.0
        %668 = vmatpush.xpose.msra.mxu0 0.0
        %669 = vmatpush.xpose.msra.mxu0 0.0
        %670 = vmatpush.xpose.msra.mxu0 %v653
        %671 = vmatmul.f32.gmra.mxu0 %v651
        %v672 = vpop.f32.mrf.mxu0
        %v673 = vadd.f32 0.0, %v672
        %674 = vdwg.mxu0
        %v675 = vsel %vm494, %v673, -inf
        %676 = vmax.xlane.f32.xlu0 %v675
        %v677 = vpop.xlane.xlu0 %676
        %v678 = vsub.f32 %v673, %v677
        %v679 = vmul.f32 %v678, 1.442695
        %v680 = vpow.pop %v679
        %v681 = vsel %vm494, %v680, 0.0
        %682 = vadd.xlane.f32.xlu0 %v681
        %v683 = vpop.xlane.xlu0 %682
        %684 = vrot.lane.b32.xlu0 %v489, 48
        %v685 = vpop.permute.xlu0 %684
        %v688 = vsel %vm494, %v680, 0
        %690 = vmatpush.msra.mxu0 0.0
        %691 = vmatpush.msra.mxu0 0.0
        %692 = vmatpush.msra.mxu0 0.0
        %693 = vmatpush.msra.mxu0 0.0
        %694 = vmatpush.msra.mxu0 0.0
        %695 = vmatpush.msra.mxu0 0.0
        %696 = vmatpush.msra.mxu0 0.0
        %697 = vmatpush.msra.mxu0 0.0
        %698 = vmatpush.msra.mxu0 0.0
        %699 = vmatpush.msra.mxu0 0.0
        %700 = vmatpush.msra.mxu0 0.0
        %701 = vmatpush.msra.mxu0 0.0
        %702 = vmatpush.msra.mxu0 0.0
        %703 = vmatpush.msra.mxu0 0.0
        %704 = vmatpush.msra.mxu0 0.0
        %705 = vmatpush.msra.mxu0 %v685
        %706 = vmatmul.f32.gmra.mxu0 %v688
        %v707 = vpop.f32.mrf.mxu0
        %v708 = vadd.f32 0.0, %v707
        %709 = vdwg.mxu0
        %v710 = vrcp.pop %v683
        %v711 = vmul.f32 %v683, %v710
        %v712 = vsub.f32 1.0, %v711
        %v713 = vmul.f32 %v710, %v712
        %v714 = vadd.f32 %v710, %v713
        %vm715 = vweird.f32 %v683
        %vm716 = vweird.f32 %v710
        %vm717 = vmor %vm715, %vm716
        %v718 = vsel %vm717, %v710, %v714
        %v719 = vand.u32 2147483647, %v683
        %vm720 = vcmp.eq.f32.partialorder %v719, 8.507059e+37
        %v721 = vand.u32 %v683, 2147483648
        %v722 = vor.u32 1.1754944e-38, %v721
        %v723 = vsel %vm720, %v722, %v718
        %v724 = vmul.f32 %v708, %v723
        %725 = vrot.lane.b32.xlu0 %v489, 104
        %v726 = vpop.permute.xlu0 %725
        %727 = vrot.lane.b32.xlu0 %v489, 72
        %v728 = vpop.permute.xlu0 %727
        %v729 = vsel %vm494, %v726, 0
        %v731 = vsel %vm494, %v728, 0
        %733 = vmatpush.xpose.msra.mxu0 0.0
        %734 = vmatpush.xpose.msra.mxu0 0.0
        %735 = vmatpush.xpose.msra.mxu0 0.0
        %736 = vmatpush.xpose.msra.mxu0 0.0
        %737 = vmatpush.xpose.msra.mxu0 0.0
        %738 = vmatpush.xpose.msra.mxu0 0.0
        %739 = vmatpush.xpose.msra.mxu0 0.0
        %740 = vmatpush.xpose.msra.mxu0 0.0
        %741 = vmatpush.xpose.msra.mxu0 0.0
        %742 = vmatpush.xpose.msra.mxu0 0.0
        %743 = vmatpush.xpose.msra.mxu0 0.0
        %744 = vmatpush.xpose.msra.mxu0 0.0
        %745 = vmatpush.xpose.msra.mxu0 0.0
        %746 = vmatpush.xpose.msra.mxu0 0.0
        %747 = vmatpush.xpose.msra.mxu0 0.0
        %748 = vmatpush.xpose.msra.mxu0 %v731
        %749 = vmatmul.f32.gmra.mxu0 %v729
        %v750 = vpop.f32.mrf.mxu0
        %v751 = vadd.f32 0.0, %v750
        %752 = vdwg.mxu0
        %v753 = vsel %vm494, %v751, -inf
        %754 = vmax.xlane.f32.xlu0 %v753
        %v755 = vpop.xlane.xlu0 %754
        %v756 = vsub.f32 %v751, %v755
        %v757 = vmul.f32 %v756, 1.442695
        %v758 = vpow.pop %v757
        %v759 = vsel %vm494, %v758, 0.0
        %760 = vadd.xlane.f32.xlu0 %v759
        %v761 = vpop.xlane.xlu0 %760
        %762 = vrot.lane.b32.xlu0 %v489, 40
        %v763 = vpop.permute.xlu0 %762
        %v766 = vsel %vm494, %v758, 0
        %768 = vmatpush.msra.mxu0 0.0
        %769 = vmatpush.msra.mxu0 0.0
        %770 = vmatpush.msra.mxu0 0.0
        %771 = vmatpush.msra.mxu0 0.0
        %772 = vmatpush.msra.mxu0 0.0
        %773 = vmatpush.msra.mxu0 0.0
        %774 = vmatpush.msra.mxu0 0.0
        %775 = vmatpush.msra.mxu0 0.0
        %776 = vmatpush.msra.mxu0 0.0
        %777 = vmatpush.msra.mxu0 0.0
        %778 = vmatpush.msra.mxu0 0.0
        %779 = vmatpush.msra.mxu0 0.0
        %780 = vmatpush.msra.mxu0 0.0
        %781 = vmatpush.msra.mxu0 0.0
        %782 = vmatpush.msra.mxu0 0.0
        %783 = vmatpush.msra.mxu0 %v763
        %784 = vmatmul.f32.gmra.mxu0 %v766
        %v785 = vpop.f32.mrf.mxu0
        %v786 = vadd.f32 0.0, %v785
        %787 = vdwg.mxu0
        %v788 = vrcp.pop %v761
        %v789 = vmul.f32 %v761, %v788
        %v790 = vsub.f32 1.0, %v789
        %v791 = vmul.f32 %v788, %v790
        %v792 = vadd.f32 %v788, %v791
        %vm793 = vweird.f32 %v761
        %vm794 = vweird.f32 %v788
        %vm795 = vmor %vm793, %vm794
        %v796 = vsel %vm795, %v788, %v792
        %v797 = vand.u32 2147483647, %v761
        %vm798 = vcmp.eq.f32.partialorder %v797, 8.507059e+37
        %v799 = vand.u32 %v761, 2147483648
        %v800 = vor.u32 1.1754944e-38, %v799
        %v801 = vsel %vm798, %v800, %v796
        %v802 = vmul.f32 %v786, %v801
        %804 = vrot.lane.b32.xlu0 %v646, 8
        %v805 = vpop.permute.xlu0 %804
        %808 = vrot.lane.b32.xlu0 %v724, 16
        %v809 = vpop.permute.xlu0 %808
        %812 = vrot.lane.b32.xlu0 %v802, 24
        %v813 = vpop.permute.xlu0 %812
        %v815 = vsel %vm494, %v568, %v805
        %vm816 = vcmask 130048
        %v817 = vsel %vm816, %v815, %v809
        %vm818 = vcmask 195584
        %v819 = vsel %vm818, %v817, %v813
        %v820 = vld [vmem:[%s3] sm:$0xff]
        %v821 = vld [vmem:[%s3 + $0x8] sm:$0xff]
        %v822 = vld [vmem:[%s3 + $0x10] sm:$0xff]
        %v823 = vld [vmem:[%s3 + $0x18] sm:$0xff]
        %v824 = vld [vmem:[%s4] sm:$0x1]
        %v826 = vperm.slane %v824, 0
        %v829 = vsel %vm467, %v819, 0
        %831 = vmatpush.msra.mxu0 0.0
        %832 = vmatpush.msra.mxu0 0.0
        %833 = vmatpush.msra.mxu0 0.0
        %834 = vmatpush.msra.mxu0 0.0
        %835 = vmatpush.msra.mxu0 0.0
        %836 = vmatpush.msra.mxu0 0.0
        %837 = vmatpush.msra.mxu0 0.0
        %838 = vmatpush.msra.mxu0 0.0
        %839 = vmatpush.msra.mxu0 0.0
        %840 = vmatpush.msra.mxu0 0.0
        %841 = vmatpush.msra.mxu0 0.0
        %842 = vmatpush.msra.mxu0 0.0
        %843 = vmatpush.msra.mxu0 %v823
        %844 = vmatpush.msra.mxu0 %v822
        %845 = vmatpush.msra.mxu0 %v821
        %846 = vmatpush.msra.mxu0 %v820
        %847 = vmatmul.f32.gmra.mxu0 %v829
        %v848 = vpop.f32.mrf.mxu0
        %v849 = vadd.f32 %v826, %v848
        %850 = vdwg.mxu0
        %v851 = vadd.f32 %v458, %v849
        %v852 = vld [vmem:[%s9] sm:$0x1]
        %v853 = vld [vmem:[%s10] sm:$0x1]
        %v854 = vsel %vm467, %v851, 0.0
        %855 = vadd.xlane.f32.xlu0 %v854
        %v856 = vpop.xlane.xlu0 %855
        %v857 = vrcp.pop 32.0
        %v858 = vmul.f32 32.0, %v857
        %v859 = vsub.f32 1.0, %v858
        %v860 = vmul.f32 %v857, %v859
        %v861 = vadd.f32 %v857, %v860
        %vm862 = vweird.f32 %v857
        %v863 = vsel %vm862, %v857, %v861
        %v864 = vmul.f32 %v856, %v863
        %v865 = vsub.f32 %v851, %v864
        %v866 = vmul.f32 %v865, %v865
        %v867 = vsel %vm467, %v866, 0.0
        %868 = vadd.xlane.f32.xlu0 %v867
        %v869 = vpop.xlane.xlu0 %868
        %v870 = vmul.f32 %v869, %v863
        %v871 = vadd.f32 %v870, 1e-05
        %v872 = vrsqrt.pop %v871
        %v873 = vmul.f32 %v872, %v871
        %v874 = vmul.f32 %v873, %v872
        %v875 = vmul.f32 0.5, %v874
        %v876 = vsub.f32 1.5, %v875
        %v877 = vmul.f32 %v872, %v876
        %vm878 = vweird.f32 %v871
        %vm879 = vweird.f32 %v872
        %vm880 = vmor %vm878, %vm879
        %v881 = vsel %vm880, %v872, %v877
        %v882 = vmul.f32 %v865, %v881
        %v884 = vperm.slane %v852, 0
        %v886 = vmul.f32 %v882, %v884
        %v888 = vperm.slane %v853, 0
        %v890 = vadd.f32 %v886, %v888
        %v891 = vld [vmem:[%s5] sm:$0xff]
        %v892 = vld [vmem:[%s5 + $0x8] sm:$0xff]
        %v893 = vld [vmem:[%s5 + $0x10] sm:$0xff]
        %v894 = vld [vmem:[%s5 + $0x18] sm:$0xff]
        %v895 = vld [vmem:[%s6] sm:$0x1]
        %v897 = vperm.slane %v895, 0
        %v900 = vsel %vm467, %v890, 0
        %902 = vmatpush.msra.mxu0 0.0
        %903 = vmatpush.msra.mxu0 0.0
        %904 = vmatpush.msra.mxu0 0.0
        %905 = vmatpush.msra.mxu0 0.0
        %906 = vmatpush.msra.mxu0 0.0
        %907 = vmatpush.msra.mxu0 0.0
        %908 = vmatpush.msra.mxu0 0.0
        %909 = vmatpush.msra.mxu0 0.0
        %910 = vmatpush.msra.mxu0 0.0
        %911 = vmatpush.msra.mxu0 0.0
        %912 = vmatpush.msra.mxu0 0.0
        %913 = vmatpush.msra.mxu0 0.0
        %914 = vmatpush.msra.mxu0 %v894
        %915 = vmatpush.msra.mxu0 %v893
        %916 = vmatpush.msra.mxu0 %v892
        %917 = vmatpush.msra.mxu0 %v891
        %918 = vmatmul.f32.gmra.mxu0 %v900
        %v919 = vpop.f32.mrf.mxu0
        %v920 = vadd.f32 %v897, %v919
        %921 = vdwg.mxu0
        %v922 = vmax.f32 %v920, 0.0
        %v923 = vld [vmem:[%s7] sm:$0xff]
        %v924 = vld [vmem:[%s7 + $0x8] sm:$0xff]
        %v925 = vld [vmem:[%s7 + $0x10] sm:$0xff]
        %v926 = vld [vmem:[%s7 + $0x18] sm:$0xff]
        %v927 = vld [vmem:[%s7 + $0x20] sm:$0xff]
        %v928 = vld [vmem:[%s7 + $0x28] sm:$0xff]
        %v929 = vld [vmem:[%s7 + $0x30] sm:$0xff]
        %v930 = vld [vmem:[%s7 + $0x38] sm:$0xff]
        %v931 = vld [vmem:[%s8] sm:$0x1]
        %v933 = vperm.slane %v931, 0
        %vm935 = vcmask 523264
        %v937 = vsel %vm935, %v922, 0
        %939 = vmatpush.msra.mxu0 0.0
        %940 = vmatpush.msra.mxu0 0.0
        %941 = vmatpush.msra.mxu0 0.0
        %942 = vmatpush.msra.mxu0 0.0
        %943 = vmatpush.msra.mxu0 0.0
        %944 = vmatpush.msra.mxu0 0.0
        %945 = vmatpush.msra.mxu0 0.0
        %946 = vmatpush.msra.mxu0 0.0
        %947 = vmatpush.msra.mxu0 %v930
        %948 = vmatpush.msra.mxu0 %v929
        %949 = vmatpush.msra.mxu0 %v928
        %950 = vmatpush.msra.mxu0 %v927
        %951 = vmatpush.msra.mxu0 %v926
        %952 = vmatpush.msra.mxu0 %v925
        %953 = vmatpush.msra.mxu0 %v924
        %954 = vmatpush.msra.mxu0 %v923
        %955 = vmatmul.f32.gmra.mxu0 %v937
        %v956 = vpop.f32.mrf.mxu0
        %v957 = vadd.f32 %v933, %v956
        %958 = vdwg.mxu0
        %v959 = vadd.f32 %v890, %v957
        %v960 = vld [vmem:[%s11] sm:$0x1]
        %v961 = vld [vmem:[%s12] sm:$0x1]
        %v962 = vsel %vm467, %v959, 0.0
        %963 = vadd.xlane.f32.xlu0 %v962
        %v964 = vpop.xlane.xlu0 %963
        %v965 = vmul.f32 %v964, %v863
        %v966 = vsub.f32 %v959, %v965
        %v967 = vmul.f32 %v966, %v966
        %v968 = vsel %vm467, %v967, 0.0
        %969 = vadd.xlane.f32.xlu0 %v968
        %v970 = vpop.xlane.xlu0 %969
        %v971 = vmul.f32 %v970, %v863
        %v972 = vadd.f32 %v971, 1e-05
        %v973 = vrsqrt.pop %v972
        %v974 = vmul.f32 %v973, %v972
        %v975 = vmul.f32 %v974, %v973
        %v976 = vmul.f32 0.5, %v975
        %v977 = vsub.f32 1.5, %v976
        %v978 = vmul.f32 %v973, %v977
        %vm979 = vweird.f32 %v972
        %vm980 = vweird.f32 %v973
        %vm981 = vmor %vm979, %vm980
        %v982 = vsel %vm981, %v973, %v978
        %v983 = vmul.f32 %v966, %v982
        %v985 = vperm.slane %v960, 0
        %v987 = vmul.f32 %v983, %v985
        %v989 = vperm.slane %v961, 0
        %v991 = vadd.f32 %v987, %v989
        %992 = vst.msk [vmem:[%s457] sm:$0xff] %vm467, %v991
        %s993 = sand.u32 %s316, 1
        %s994 = scalar_lea.sflag [#allocation4], %s993
        %s995 = sand.u32 %s316, 1
        %s996 = smul.addr %s995, 8
        %s997 = scalar_lea.vmem [#allocation5], %s996
        // Predicated region
        $region77: #{tpu_custom_call.1} parent=71 // pred_check
          %p998 = pneg %p326
        $region78: #{tpu_custom_call.1} parent=71 // pred_check_branch
          %1000 = sbr.rel (%p998) target = $region80
        $region79: #{tpu_custom_call.1} parent=71 // pred_region
          %1002 = vsyncadd %s994, 0
          %s1003 = smul.addr %s30, 8
          %s1004 = scalar_lea.hbm %s13, %s1003
          %s1006 = sshll.u32 %s997, 4
          %s1007 = int_to_ptr.vmem [resolvable:$true] %s1006
          %s1008 = sshll.u32 %s1004, 4
          %s1009 = int_to_ptr.hbm [resolvable:$true] %s1008
          %1011 = dma.vmem_to_hbm [thread:$0]  %s1007, 128, %s1009, %s994
        $region80: #{tpu_custom_call.1} parent=71 // pred_fallthru
          _
      $region72: #{tpu_custom_call.1} parent=5 // pred_fallthru
        _
      %p1012 = scmp.le.s32.totalorder 2, %s25
      // Predicated region
      $region81: #{tpu_custom_call.1} parent=5 // pred_check
        %p1013 = pneg %p1012
      $region82: #{tpu_custom_call.1} parent=5 // pred_check_branch
        %1015 = sbr.rel (%p1013) target = $region84
      $region83: #{tpu_custom_call.1} parent=5 // pred_region
        %s1016 = ssub.s32 %s25, 2
        // Predicated region
        $region85: #{tpu_custom_call.1} parent=83 // pred_check
          %p1017 = pneg %p332
        $region86: #{tpu_custom_call.1} parent=83 // pred_check_branch
          %1019 = sbr.rel (%p1017) target = $region88
        $region87: #{tpu_custom_call.1} parent=83 // pred_region
          %s1020 = sand.u32 %s317, 1
          %s1021 = scalar_lea.sflag [#allocation4], %s1020
          %s1022 = sand.u32 %s317, 1
          %s1023 = smul.addr %s1022, 8
          %s1024 = scalar_lea.vmem [#allocation5], %s1023
          %1026 = dma.done %s1021, 128
        $region88: #{tpu_custom_call.1} parent=83 // pred_fallthru
          _
      $region84: #{tpu_custom_call.1} parent=5 // pred_fallthru
        _
    $region6: #{tpu_custom_call.1} parent=1 // loop_footer
      %s29 = sadd.s32 1, %s25
    $region7: #{tpu_custom_call.1} parent=1 // loop_footer_branch
      %24 = sbr.rel target = $region3
    $region8: #{tpu_custom_call.1} parent=1 // loop_exit
      _
    %1027 = vsyncpa [#allocation3], 1
    %s1028 = scalar_lea.sflag [#allocation3], 1
    %1029 = vsyncpa %s1028, 1
    %1030 = vsyncpa [#allocation4], 1
    %s1031 = scalar_lea.sflag [#allocation4], 1
    %1032 = vsyncpa %s1031, 1

</llo_original>
